<compile_context>
chip_gen: v7x
topology: tpu7x:2x2x1
jax: 0.10.0
libtpu: 0.0.40
codegen_flags: <defaults>
</compile_context>

<pallas_src>
import math

import jax
import jax.numpy as jnp
from jax.experimental import pallas as pl
from jax.experimental.pallas import tpu as pltpu

# ---- small stand-in sizes (consistent with the module's forward) ----
B = 2
IMG = 24              # input spatial size (stand-in for 384)
PATCH = 2             # -> 12x12 token grid, matching x.view(B, C, 12, 12)
GRID = IMG // PATCH                     # 12
GRID_HW = GRID * GRID                   # 144
PATCH_DIM = 3 * PATCH * PATCH           # 12
CF = 128              # swin feature dim (stand-in for 1024; lane-dense)
P = 6                 # parsing classes ("hrnetv2_224_lip_six")
LINEAR = 16           # ClassBlock bottleneck (stand-in for linear_num=512)
CLASS_NUM = 8         # stand-in for 751
LIN_PAD = 128         # lane-dense pad of the ClassBlock bottleneck output
CLS_PAD = 128         # lane-dense pad of the classifier logits output
BN_EPS = 1e-5


# --------------------------------------------------------------------------
# Fused Pallas kernel: whole SPSwin forward for one batch element.
# --------------------------------------------------------------------------
def _spswin_fused_kernel(patches_ref, sw_ref, sb_ref, hw_ref, hb_ref,
                         w1g_ref, w1p_ref, bns_ref, bnb_ref,
                         w2g_ref, w2p_ref, b2_ref,
                         logits_ref, feats_ref):
    p = patches_ref[0]                                        # [HW, PATCH_DIM]

    # TODO(synk): Swin backbone -> per-patch linear embedding stand-in.
    feat = jnp.dot(p, sw_ref[...],
                   preferred_element_type=jnp.float32) + sb_ref[...]   # [HW, CF]
    # TODO(synk): HRNet parsing model + bilinear resize -> per-patch linear
    # segmentation-head stand-in producing logits directly on the 12x12 grid.
    plog = jnp.dot(p, hw_ref[...],
                   preferred_element_type=jnp.float32) + hb_ref[...]   # [HW, P]

    # softmax over parsing channels (PyTorch: Softmax(dim=1) on NCHW)
    m = jnp.max(plog, axis=-1, keepdims=True)
    e = jnp.exp(plog - m)
    sm = e * pl.reciprocal(jnp.sum(e, axis=-1, keepdims=True), approx=True)

    sm0 = sm[:, 0:1]                                   # background probability
    fg = 1.0 - sm0                                     # x_foreground
    rest = jnp.sum(sm, axis=-1, keepdims=True) - sm0   # sum of part channels
    # F.normalize(cat(fg, sm[:, 1:]), p=1, dim=1): all entries are >= 0
    inv_den = pl.reciprocal(jnp.maximum(fg + rest, 1e-12), approx=True)
    mask_fg = fg * inv_den                 # normalized foreground mask
    mask_parts = rest * inv_den            # sum of the normalized part masks

    # AdaptiveAvgPool2d((1,1)): divide by HW.  Build all 3 pooled rows at once.
    inv_hw = 1.0 / p.shape[0]
    pooled = jnp.concatenate(
        [jnp.sum(feat, axis=0, keepdims=True),                 # global pool
         jnp.sum(feat * mask_fg, axis=0, keepdims=True),       # foreground pool
         jnp.sum(feat * mask_parts, axis=0, keepdims=True)],   # summed part pools
        axis=0) * inv_hw                                       # [3, CF]

    # ClassBlocks: row 0 -> classifier0, rows 1 & 2 -> classifier1 (shared).
    row = jax.lax.broadcasted_iota(jnp.int32, (3, 1), 0)
    is_global = row == 0

    # add_block: Linear -> BatchNorm1d (bias + BN folded into scale/bias)
    h = jnp.where(
        is_global,
        jnp.dot(pooled, w1g_ref[...], preferred_element_type=jnp.float32),
        jnp.dot(pooled, w1p_ref[...], preferred_element_type=jnp.float32))
    h = h * bns_ref[...] + bnb_ref[...]                        # [3, LIN_PAD]
    feats_ref[0] = h                                           # one lane-dense store

    # classifier: Linear
    logits = jnp.where(
        is_global,
        jnp.dot(h, w2g_ref[...], preferred_element_type=jnp.float32),
        jnp.dot(h, w2p_ref[...], preferred_element_type=jnp.float32))
    logits_ref[0] = logits + b2_ref[...]                       # one lane-dense store


def spswin_fused(patches, fp):
    Bn = patches.shape[0]
    const = lambda b: (0, 0)
    logits, feats = pl.pallas_call(
        _spswin_fused_kernel,
        out_shape=(jax.ShapeDtypeStruct((Bn, 3, CLS_PAD), jnp.float32),
                   jax.ShapeDtypeStruct((Bn, 3, LIN_PAD), jnp.float32)),
        grid=(Bn,),
        in_specs=[
            pl.BlockSpec((1, GRID_HW, PATCH_DIM), lambda b: (b, 0, 0)),
            pl.BlockSpec((PATCH_DIM, CF), const),
            pl.BlockSpec((1, CF), const),
            pl.BlockSpec((PATCH_DIM, P), const),
            pl.BlockSpec((1, P), const),
            pl.BlockSpec((CF, LIN_PAD), const),
            pl.BlockSpec((CF, LIN_PAD), const),
            pl.BlockSpec((3, LIN_PAD), const),
            pl.BlockSpec((3, LIN_PAD), const),
            pl.BlockSpec((LIN_PAD, CLS_PAD), const),
            pl.BlockSpec((LIN_PAD, CLS_PAD), const),
            pl.BlockSpec((3, CLS_PAD), const),
        ],
        out_specs=(pl.BlockSpec((1, 3, CLS_PAD), lambda b: (b, 0, 0)),
                   pl.BlockSpec((1, 3, LIN_PAD), lambda b: (b, 0, 0))),
        compiler_params=pltpu.CompilerParams(
            dimension_semantics=("parallel",)),
    )(patches, fp["swin_w"], fp["swin_b"], fp["hrnet_w"], fp["hrnet_b"],
      fp["w1_g"], fp["w1_p"], fp["bn_scale"], fp["bn_bias"],
      fp["w2_g"], fp["w2_p"], fp["b2"])
    return logits, feats


# --------------------------------------------------------------------------
# Parameter init (deterministic, mirrors weights_init_kaiming / _classifier)
# --------------------------------------------------------------------------
def init_classblock(key, in_dim, linear, class_num):
    k1, k2, k3 = jax.random.split(key, 3)
    # Linear: kaiming_normal_(a=0, mode='fan_out') -> std = sqrt(2 / fan_out)
    w1 = jax.random.normal(k1, (in_dim, linear), jnp.float32) * math.sqrt(2.0 / linear)
    b1 = jnp.zeros((1, linear), jnp.float32)
    # BatchNorm1d: weight ~ N(1, 0.02), bias = 0
    gamma = 1.0 + 0.02 * jax.random.normal(k2, (1, linear), jnp.float32)
    beta = jnp.zeros((1, linear), jnp.float32)
    # classifier Linear: weight ~ N(0, 0.001), bias = 0
    w2 = 0.001 * jax.random.normal(k3, (linear, class_num), jnp.float32)
    b2 = jnp.zeros((1, class_num), jnp.float32)
    return dict(w1=w1, b1=b1, gamma=gamma, beta=beta, w2=w2, b2=b2)


def init_params(key):
    ks, kh, k0, k1, k2 = jax.random.split(key, 5)
    return dict(
        swin_w=jax.random.normal(ks, (PATCH_DIM, CF), jnp.float32)
        * math.sqrt(2.0 / PATCH_DIM),
        swin_b=jnp.zeros((1, CF), jnp.float32),
        hrnet_w=jax.random.normal(kh, (PATCH_DIM, P), jnp.float32)
        * math.sqrt(2.0 / PATCH_DIM),
        hrnet_b=jnp.zeros((1, P), jnp.float32),
        cls0=init_classblock(k0, CF, LINEAR, CLASS_NUM),
        cls1=init_classblock(k1, CF, LINEAR, CLASS_NUM),
        # classifier2 exists in __init__ but is never used in forward
        cls2=init_classblock(k2, CF, LINEAR, CLASS_NUM),
    )


def prepare_fused_params(params):
    """One-time: fold Linear bias + inference BN, stack the 3 ClassBlock rows
    (row0=classifier0, rows1-2=classifier1) and zero-pad to lane-dense widths."""
    def pad_cols(a, n):
        return jnp.pad(a, ((0, 0), (0, n - a.shape[1])))

    def bn_fold(cb):
        scale = cb["gamma"] / jnp.sqrt(jnp.float32(1.0 + BN_EPS))  # var=1, mean=0
        bias = cb["b1"] * scale + cb["beta"]                       # bias folded thru BN
        return scale, bias

    s0, t0 = bn_fold(params["cls0"])
    s1, t1 = bn_fold(params["cls1"])
    bn_scale = pad_cols(jnp.concatenate([s0, s1, s1], axis=0), LIN_PAD)
    bn_bias = pad_cols(jnp.concatenate([t0, t1, t1], axis=0), LIN_PAD)
    w1_g = pad_cols(params["cls0"]["w1"], LIN_PAD)
    w1_p = pad_cols(params["cls1"]["w1"], LIN_PAD)

    def pad_w2(w):
        return jnp.pad(w, ((0, LIN_PAD - w.shape[0]), (0, CLS_PAD - w.shape[1])))

    w2_g = pad_w2(params["cls0"]["w2"])
    w2_p = pad_w2(params["cls1"]["w2"])
    b2 = pad_cols(jnp.concatenate([params["cls0"]["b2"],
                                   params["cls1"]["b2"],
                                   params["cls1"]["b2"]], axis=0), CLS_PAD)
    return dict(swin_w=params["swin_w"], swin_b=params["swin_b"],
                hrnet_w=params["hrnet_w"], hrnet_b=params["hrnet_b"],
                w1_g=w1_g, w1_p=w1_p, bn_scale=bn_scale, bn_bias=bn_bias,
                w2_g=w2_g, w2_p=w2_p, b2=b2)


# --------------------------------------------------------------------------
# Glue + full forward
# --------------------------------------------------------------------------
def extract_patches(x):
    """NCHW image -> [B, HW, C*PATCH*PATCH] patch matrix (row-major tokens)."""
    Bn, C, H, W = x.shape
    gh, gw = H // PATCH, W // PATCH
    x = x.reshape(Bn, C, gh, PATCH, gw, PATCH)
    x = jnp.transpose(x, (0, 2, 4, 1, 3, 5))
    return x.reshape(Bn, gh * gw, C * PATCH * PATCH)


def sp_swin_forward(x, fused_params):
    patches = extract_patches(x)                       # [B, HW, PATCH_DIM]
    logits, feats = spswin_fused(patches, fused_params)  # [B,3,CLS_PAD],[B,3,LIN_PAD]

    # slice the lane-dense slabs back to the logical widths
    y_global = [logits[:, 0, :CLASS_NUM], feats[:, 0, :LINEAR]]
    y_fore = [logits[:, 1, :CLASS_NUM], feats[:, 1, :LINEAR]]
    y_part = [logits[:, 2, :CLASS_NUM], feats[:, 2, :LINEAR]]
    return [y_global, y_fore, y_part]   # test=False -> list of [logits, feat]


if __name__ == "__main__":
    key = jax.random.PRNGKey(0)
    kx, kp = jax.random.split(key)
    x = jax.random.normal(kx, (B, 3, IMG, IMG), jnp.float32)   # NCHW input
    params = init_params(kp)
    fused_params = prepare_fused_params(params)                # one-time pad/fold
    fwd = jax.jit(sp_swin_forward)
    y = fwd(x, fused_params)
    jax.tree_util.tree_map(lambda a: a.block_until_ready(), y)
    print("KERNEL_OK")
</pallas_src>

<mosaic_0001>
module attributes {stable_mosaic.version = 11 : i64} {
  func.func @_spswin_fused_kernel(%arg0: i32, %arg1: memref<1x144x12xf32, #tpu.memory_space<vmem>>, %arg2: memref<12x128xf32, #tpu.memory_space<vmem>>, %arg3: memref<1x128xf32, #tpu.memory_space<vmem>>, %arg4: memref<12x6xf32, #tpu.memory_space<vmem>>, %arg5: memref<1x6xf32, #tpu.memory_space<vmem>>, %arg6: memref<128x128xf32, #tpu.memory_space<vmem>>, %arg7: memref<128x128xf32, #tpu.memory_space<vmem>>, %arg8: memref<3x128xf32, #tpu.memory_space<vmem>>, %arg9: memref<3x128xf32, #tpu.memory_space<vmem>>, %arg10: memref<128x128xf32, #tpu.memory_space<vmem>>, %arg11: memref<128x128xf32, #tpu.memory_space<vmem>>, %arg12: memref<3x128xf32, #tpu.memory_space<vmem>>, %arg13: memref<1x3x128xf32, #tpu.memory_space<vmem>>, %arg14: memref<1x3x128xf32, #tpu.memory_space<vmem>>) attributes {dimension_semantics = [#tpu.dimension_semantics<parallel>], iteration_bounds = array<i64: 2>, scalar_prefetch = 0 : i64, scratch_operands = 0 : i64, tpu.core_type = #tpu.core_type<tc>, window_params = [{transform_indices = @transform_0, window_bounds = array<i64: 1, 144, 12>}, {pipeline_mode = #tpu.pipeline_mode<synchronous>, transform_indices = @transform_1, window_bounds = array<i64: 12, 128>}, {pipeline_mode = #tpu.pipeline_mode<synchronous>, transform_indices = @transform_2, window_bounds = array<i64: 1, 128>}, {pipeline_mode = #tpu.pipeline_mode<synchronous>, transform_indices = @transform_3, window_bounds = array<i64: 12, 6>}, {pipeline_mode = #tpu.pipeline_mode<synchronous>, transform_indices = @transform_4, window_bounds = array<i64: 1, 6>}, {pipeline_mode = #tpu.pipeline_mode<synchronous>, transform_indices = @transform_5, window_bounds = array<i64: 128, 128>}, {pipeline_mode = #tpu.pipeline_mode<synchronous>, transform_indices = @transform_6, window_bounds = array<i64: 128, 128>}, {pipeline_mode = #tpu.pipeline_mode<synchronous>, transform_indices = @transform_7, window_bounds = array<i64: 3, 128>}, {pipeline_mode = #tpu.pipeline_mode<synchronous>, transform_indices = @transform_8, window_bounds = array<i64: 3, 128>}, {pipeline_mode = #tpu.pipeline_mode<synchronous>, transform_indices = @transform_9, window_bounds = array<i64: 128, 128>}, {pipeline_mode = #tpu.pipeline_mode<synchronous>, transform_indices = @transform_10, window_bounds = array<i64: 128, 128>}, {pipeline_mode = #tpu.pipeline_mode<synchronous>, transform_indices = @transform_11, window_bounds = array<i64: 3, 128>}, {transform_indices = @transform_12, window_bounds = array<i64: 1, 3, 128>}, {transform_indices = @transform_13, window_bounds = array<i64: 1, 3, 128>}]} {
    %c0 = arith.constant 0 : index
    %c0_0 = arith.constant 0 : index
    %c0_1 = arith.constant 0 : index
    %0 = vector.load %arg1[%c0, %c0_0, %c0_1] : memref<1x144x12xf32, #tpu.memory_space<vmem>>, vector<1x144x12xf32>
    %1 = vector.shape_cast %0 : vector<1x144x12xf32> to vector<144x12xf32>
    %c0_2 = arith.constant 0 : index
    %c0_3 = arith.constant 0 : index
    %2 = vector.load %arg2[%c0_2, %c0_3] : memref<12x128xf32, #tpu.memory_space<vmem>>, vector<12x128xf32>
    %cst = arith.constant dense<0.000000e+00> : vector<144x128xf32>
    %3 = tpu.matmul %1, %2, %cst {dimension_numbers = #tpu.dot_dimension_numbers<[1], [0], [0], [1], [0, 0, 1, 1], [], []>} : vector<144x12xf32>, vector<12x128xf32>, vector<144x128xf32> -> vector<144x128xf32>
    %c0_4 = arith.constant 0 : index
    %c0_5 = arith.constant 0 : index
    %4 = vector.load %arg3[%c0_4, %c0_5] : memref<1x128xf32, #tpu.memory_space<vmem>>, vector<1x128xf32>
    %5 = vector.broadcast %4 : vector<1x128xf32> to vector<144x128xf32>
    %6 = arith.addf %3, %5 : vector<144x128xf32>
    %c0_6 = arith.constant 0 : index
    %c0_7 = arith.constant 0 : index
    %7 = vector.load %arg4[%c0_6, %c0_7] : memref<12x6xf32, #tpu.memory_space<vmem>>, vector<12x6xf32>
    %cst_8 = arith.constant dense<0.000000e+00> : vector<144x6xf32>
    %8 = tpu.matmul %1, %7, %cst_8 {dimension_numbers = #tpu.dot_dimension_numbers<[1], [0], [0], [1], [0, 0, 1, 1], [], []>} : vector<144x12xf32>, vector<12x6xf32>, vector<144x6xf32> -> vector<144x6xf32>
    %c0_9 = arith.constant 0 : index
    %c0_10 = arith.constant 0 : index
    %9 = vector.load %arg5[%c0_9, %c0_10] : memref<1x6xf32, #tpu.memory_space<vmem>>, vector<1x6xf32>
    %10 = vector.broadcast %9 : vector<1x6xf32> to vector<144x6xf32>
    %11 = arith.addf %8, %10 : vector<144x6xf32>
    %cst_11 = arith.constant dense<0xFF800000> : vector<144xf32>
    %12 = vector.multi_reduction <maximumf>, %11, %cst_11 [1] : vector<144x6xf32> to vector<144xf32>
    %13 = vector.shape_cast %12 : vector<144xf32> to vector<144x1xf32>
    %14 = vector.broadcast %13 : vector<144x1xf32> to vector<144x6xf32>
    %15 = arith.subf %11, %14 : vector<144x6xf32>
    %16 = math.exp %15 : vector<144x6xf32>
    %cst_12 = arith.constant dense<0.000000e+00> : vector<144xf32>
    %17 = vector.multi_reduction <add>, %16, %cst_12 [1] : vector<144x6xf32> to vector<144xf32>
    %18 = vector.shape_cast %17 : vector<144xf32> to vector<144x1xf32>
    %19 = tpu.reciprocal %18 {approx = true} : vector<144x1xf32> -> vector<144x1xf32>
    %20 = vector.broadcast %19 : vector<144x1xf32> to vector<144x6xf32>
    %21 = arith.mulf %16, %20 : vector<144x6xf32>
    %22 = vector.extract_strided_slice %21 {offsets = [0, 0], sizes = [144, 1], strides = [1, 1]} : vector<144x6xf32> to vector<144x1xf32>
    %cst_13 = arith.constant 1.000000e+00 : f32
    %23 = vector.broadcast %cst_13 : f32 to vector<144x1xf32>
    %24 = arith.subf %23, %22 : vector<144x1xf32>
    %cst_14 = arith.constant dense<0.000000e+00> : vector<144xf32>
    %25 = vector.multi_reduction <add>, %21, %cst_14 [1] : vector<144x6xf32> to vector<144xf32>
    %26 = vector.shape_cast %25 : vector<144xf32> to vector<144x1xf32>
    %27 = arith.subf %26, %22 : vector<144x1xf32>
    %28 = arith.addf %24, %27 : vector<144x1xf32>
    %cst_15 = arith.constant 9.99999996E-13 : f32
    %29 = vector.broadcast %cst_15 : f32 to vector<144x1xf32>
    %30 = arith.maximumf %28, %29 : vector<144x1xf32>
    %31 = tpu.reciprocal %30 {approx = true} : vector<144x1xf32> -> vector<144x1xf32>
    %32 = arith.mulf %24, %31 : vector<144x1xf32>
    %33 = arith.mulf %27, %31 : vector<144x1xf32>
    %cst_16 = arith.constant dense<0.000000e+00> : vector<128xf32>
    %34 = vector.multi_reduction <add>, %6, %cst_16 [0] : vector<144x128xf32> to vector<128xf32>
    %35 = vector.shape_cast %34 : vector<128xf32> to vector<1x128xf32>
    %36 = vector.broadcast %32 : vector<144x1xf32> to vector<144x128xf32>
    %37 = arith.mulf %6, %36 : vector<144x128xf32>
    %cst_17 = arith.constant dense<0.000000e+00> : vector<128xf32>
    %38 = vector.multi_reduction <add>, %37, %cst_17 [0] : vector<144x128xf32> to vector<128xf32>
    %39 = vector.shape_cast %38 : vector<128xf32> to vector<1x128xf32>
    %40 = vector.broadcast %33 : vector<144x1xf32> to vector<144x128xf32>
    %41 = arith.mulf %6, %40 : vector<144x128xf32>
    %cst_18 = arith.constant dense<0.000000e+00> : vector<128xf32>
    %42 = vector.multi_reduction <add>, %41, %cst_18 [0] : vector<144x128xf32> to vector<128xf32>
    %43 = vector.shape_cast %42 : vector<128xf32> to vector<1x128xf32>
    %44 = tpu.concatenate %35, %39, %43 in 0 : vector<1x128xf32>, vector<1x128xf32>, vector<1x128xf32> -> vector<3x128xf32>
    %cst_19 = arith.constant 0.0069444445 : f32
    %45 = vector.broadcast %cst_19 : f32 to vector<3x128xf32>
    %46 = arith.mulf %44, %45 : vector<3x128xf32>
    %47 = tpu.iota {dimensions = array<i32: 0>} : vector<3x1xi32>
    %c0_i32 = arith.constant 0 : i32
    %48 = vector.broadcast %c0_i32 : i32 to vector<3x1xi32>
    %49 = arith.cmpi eq, %47, %48 : vector<3x1xi32>
    %c0_20 = arith.constant 0 : index
    %c0_21 = arith.constant 0 : index
    %50 = vector.load %arg6[%c0_20, %c0_21] : memref<128x128xf32, #tpu.memory_space<vmem>>, vector<128x128xf32>
    %cst_22 = arith.constant dense<0.000000e+00> : vector<3x128xf32>
    %51 = tpu.matmul %46, %50, %cst_22 {dimension_numbers = #tpu.dot_dimension_numbers<[1], [0], [0], [1], [0, 0, 1, 1], [], []>} : vector<3x128xf32>, vector<128x128xf32>, vector<3x128xf32> -> vector<3x128xf32>
    %c0_23 = arith.constant 0 : index
    %c0_24 = arith.constant 0 : index
    %52 = vector.load %arg7[%c0_23, %c0_24] : memref<128x128xf32, #tpu.memory_space<vmem>>, vector<128x128xf32>
    %cst_25 = arith.constant dense<0.000000e+00> : vector<3x128xf32>
    %53 = tpu.matmul %46, %52, %cst_25 {dimension_numbers = #tpu.dot_dimension_numbers<[1], [0], [0], [1], [0, 0, 1, 1], [], []>} : vector<3x128xf32>, vector<128x128xf32>, vector<3x128xf32> -> vector<3x128xf32>
    %54 = vector.shape_cast %49 : vector<3x1xi1> to vector<3x1xi1>
    %55 = vector.broadcast %54 : vector<3x1xi1> to vector<3x128xi1>
    %56 = arith.select %55, %51, %53 : vector<3x128xi1>, vector<3x128xf32>
    %c0_26 = arith.constant 0 : index
    %c0_27 = arith.constant 0 : index
    %57 = vector.load %arg8[%c0_26, %c0_27] : memref<3x128xf32, #tpu.memory_space<vmem>>, vector<3x128xf32>
    %58 = arith.mulf %56, %57 : vector<3x128xf32>
    %c0_28 = arith.constant 0 : index
    %c0_29 = arith.constant 0 : index
    %59 = vector.load %arg9[%c0_28, %c0_29] : memref<3x128xf32, #tpu.memory_space<vmem>>, vector<3x128xf32>
    %60 = arith.addf %58, %59 : vector<3x128xf32>
    %c0_30 = arith.constant 0 : index
    %c0_31 = arith.constant 0 : index
    %c0_32 = arith.constant 0 : index
    %61 = vector.load %arg14[%c0_30, %c0_31, %c0_32] : memref<1x3x128xf32, #tpu.memory_space<vmem>>, vector<1x3x128xf32>
    %62 = vector.shape_cast %61 : vector<1x3x128xf32> to vector<3x128xf32>
    %63 = vector.shape_cast %60 : vector<3x128xf32> to vector<1x3x128xf32>
    tpu.vector_store %arg14[%c0_30, %c0_31, %c0_32], %63 {strides = array<i32>} : memref<1x3x128xf32, #tpu.memory_space<vmem>>, vector<1x3x128xf32>,
    %c0_33 = arith.constant 0 : index
    %c0_34 = arith.constant 0 : index
    %64 = vector.load %arg10[%c0_33, %c0_34] : memref<128x128xf32, #tpu.memory_space<vmem>>, vector<128x128xf32>
    %cst_35 = arith.constant dense<0.000000e+00> : vector<3x128xf32>
    %65 = tpu.matmul %60, %64, %cst_35 {dimension_numbers = #tpu.dot_dimension_numbers<[1], [0], [0], [1], [0, 0, 1, 1], [], []>} : vector<3x128xf32>, vector<128x128xf32>, vector<3x128xf32> -> vector<3x128xf32>
    %c0_36 = arith.constant 0 : index
    %c0_37 = arith.constant 0 : index
    %66 = vector.load %arg11[%c0_36, %c0_37] : memref<128x128xf32, #tpu.memory_space<vmem>>, vector<128x128xf32>
    %cst_38 = arith.constant dense<0.000000e+00> : vector<3x128xf32>
    %67 = tpu.matmul %60, %66, %cst_38 {dimension_numbers = #tpu.dot_dimension_numbers<[1], [0], [0], [1], [0, 0, 1, 1], [], []>} : vector<3x128xf32>, vector<128x128xf32>, vector<3x128xf32> -> vector<3x128xf32>
    %68 = vector.shape_cast %49 : vector<3x1xi1> to vector<3x1xi1>
    %69 = vector.broadcast %68 : vector<3x1xi1> to vector<3x128xi1>
    %70 = arith.select %69, %65, %67 : vector<3x128xi1>, vector<3x128xf32>
    %c0_39 = arith.constant 0 : index
    %c0_40 = arith.constant 0 : index
    %71 = vector.load %arg12[%c0_39, %c0_40] : memref<3x128xf32, #tpu.memory_space<vmem>>, vector<3x128xf32>
    %72 = arith.addf %70, %71 : vector<3x128xf32>
    %c0_41 = arith.constant 0 : index
    %c0_42 = arith.constant 0 : index
    %c0_43 = arith.constant 0 : index
    %73 = vector.load %arg13[%c0_41, %c0_42, %c0_43] : memref<1x3x128xf32, #tpu.memory_space<vmem>>, vector<1x3x128xf32>
    %74 = vector.shape_cast %73 : vector<1x3x128xf32> to vector<3x128xf32>
    %75 = vector.shape_cast %72 : vector<3x128xf32> to vector<1x3x128xf32>
    tpu.vector_store %arg13[%c0_41, %c0_42, %c0_43], %75 {strides = array<i32>} : memref<1x3x128xf32, #tpu.memory_space<vmem>>, vector<1x3x128xf32>,
    return
  }
  func.func @transform_0(%arg0: i32) -> (i32, i32, i32) {
    %c0_i32 = arith.constant 0 : i32
    %c0_i32_0 = arith.constant 0 : i32
    %c0_i32_1 = arith.constant 0 : i32
    return %arg0, %c0_i32, %c0_i32_0 : i32, i32, i32
  }
  func.func @transform_1(%arg0: i32) -> (i32, i32) {
    %c0_i32 = arith.constant 0 : i32
    %c0_i32_0 = arith.constant 0 : i32
    %c0_i32_1 = arith.constant 0 : i32
    return %c0_i32, %c0_i32_0 : i32, i32
  }
  func.func @transform_2(%arg0: i32) -> (i32, i32) {
    %c0_i32 = arith.constant 0 : i32
    %c0_i32_0 = arith.constant 0 : i32
    %c0_i32_1 = arith.constant 0 : i32
    return %c0_i32, %c0_i32_0 : i32, i32
  }
  func.func @transform_3(%arg0: i32) -> (i32, i32) {
    %c0_i32 = arith.constant 0 : i32
    %c0_i32_0 = arith.constant 0 : i32
    %c0_i32_1 = arith.constant 0 : i32
    return %c0_i32, %c0_i32_0 : i32, i32
  }
  func.func @transform_4(%arg0: i32) -> (i32, i32) {
    %c0_i32 = arith.constant 0 : i32
    %c0_i32_0 = arith.constant 0 : i32
    %c0_i32_1 = arith.constant 0 : i32
    return %c0_i32, %c0_i32_0 : i32, i32
  }
  func.func @transform_5(%arg0: i32) -> (i32, i32) {
    %c0_i32 = arith.constant 0 : i32
    %c0_i32_0 = arith.constant 0 : i32
    %c0_i32_1 = arith.constant 0 : i32
    return %c0_i32, %c0_i32_0 : i32, i32
  }
  func.func @transform_6(%arg0: i32) -> (i32, i32) {
    %c0_i32 = arith.constant 0 : i32
    %c0_i32_0 = arith.constant 0 : i32
    %c0_i32_1 = arith.constant 0 : i32
    return %c0_i32, %c0_i32_0 : i32, i32
  }
  func.func @transform_7(%arg0: i32) -> (i32, i32) {
    %c0_i32 = arith.constant 0 : i32
    %c0_i32_0 = arith.constant 0 : i32
    %c0_i32_1 = arith.constant 0 : i32
    return %c0_i32, %c0_i32_0 : i32, i32
  }
  func.func @transform_8(%arg0: i32) -> (i32, i32) {
    %c0_i32 = arith.constant 0 : i32
    %c0_i32_0 = arith.constant 0 : i32
    %c0_i32_1 = arith.constant 0 : i32
    return %c0_i32, %c0_i32_0 : i32, i32
  }
  func.func @transform_9(%arg0: i32) -> (i32, i32) {
    %c0_i32 = arith.constant 0 : i32
    %c0_i32_0 = arith.constant 0 : i32
    %c0_i32_1 = arith.constant 0 : i32
    return %c0_i32, %c0_i32_0 : i32, i32
  }
  func.func @transform_10(%arg0: i32) -> (i32, i32) {
    %c0_i32 = arith.constant 0 : i32
    %c0_i32_0 = arith.constant 0 : i32
    %c0_i32_1 = arith.constant 0 : i32
    return %c0_i32, %c0_i32_0 : i32, i32
  }
  func.func @transform_11(%arg0: i32) -> (i32, i32) {
    %c0_i32 = arith.constant 0 : i32
    %c0_i32_0 = arith.constant 0 : i32
    %c0_i32_1 = arith.constant 0 : i32
    return %c0_i32, %c0_i32_0 : i32, i32
  }
  func.func @transform_12(%arg0: i32) -> (i32, i32, i32) {
    %c0_i32 = arith.constant 0 : i32
    %c0_i32_0 = arith.constant 0 : i32
    %c0_i32_1 = arith.constant 0 : i32
    return %arg0, %c0_i32, %c0_i32_0 : i32, i32, i32
  }
  func.func @transform_13(%arg0: i32) -> (i32, i32, i32) {
    %c0_i32 = arith.constant 0 : i32
    %c0_i32_0 = arith.constant 0 : i32
    %c0_i32_1 = arith.constant 0 : i32
    return %arg0, %c0_i32, %c0_i32_0 : i32, i32, i32
  }
}

</mosaic_0001>

<llo_original>
// kernel: sp_swin_forward.1
$region0: #{sp_swin_forward.1}
  #allocation0 [shape = 'u32[]', space=smem, size = 0x4, offset = 0x4, fixed_abs, tag = 'smem constant byte address 0x4 - core index']
  #allocation1 [shape = 'u32[144,128]{1,0:T(1,128)}', space=vmem, size = 0x12000, scoped, tag = 'internal scratch']
  %s0 = inlined_call_operand.vmem [shape: f32[2,144,12], index: 0, kind: input, shape index: {}]
  %s1 = inlined_call_operand.vmem [shape: f32[12,128], index: 1, kind: input, shape index: {}]
  %s2 = inlined_call_operand.vmem [shape: f32[1,128], index: 2, kind: input, shape index: {}]
  %s3 = inlined_call_operand.vmem [shape: f32[12,6], index: 3, kind: input, shape index: {}]
  %s4 = inlined_call_operand.vmem [shape: f32[1,6], index: 4, kind: input, shape index: {}]
  %s5 = inlined_call_operand.vmem [shape: f32[128,128], index: 5, kind: input, shape index: {}]
  %s6 = inlined_call_operand.vmem [shape: f32[128,128], index: 6, kind: input, shape index: {}]
  %s7 = inlined_call_operand.vmem [shape: f32[3,128], index: 7, kind: input, shape index: {}]
  %s8 = inlined_call_operand.vmem [shape: f32[3,128], index: 8, kind: input, shape index: {}]
  %s9 = inlined_call_operand.vmem [shape: f32[128,128], index: 9, kind: input, shape index: {}]
  %s10 = inlined_call_operand.vmem [shape: f32[128,128], index: 10, kind: input, shape index: {}]
  %s11 = inlined_call_operand.vmem [shape: f32[3,128], index: 11, kind: input, shape index: {}]
  %s12 = inlined_call_operand.vmem [shape: f32[2,3,128], index: 12, kind: output, shape index: {0}]
  %s13 = inlined_call_operand.vmem [shape: f32[2,3,128], index: 13, kind: output, shape index: {1}]
  %14 = xla_tuple %s12, %s13
  %s15 = sld [smem:[#allocation0]]
  $region89: #{sp_swin_forward.1} parent=0
    _
  %s17 = ssub.s32 1, %s15
  %s18 = scalar_select 0, %s17, %s15
  loop: start=0, step=1, limit=4
  $region2: #{sp_swin_forward.1} parent=0 // loop_pre_header
    _
  $region3: #{sp_swin_forward.1} parent=0 // loop_header
    %s20 = sphi 0, %s24
    %p21 = scmp.ge.s32.totalorder %s20, 4
    %s30 = sphi 0, %s32
    %s33 = sphi 0, %s30
    %s34 = sphi 0, %s33
    %s50 = sphi 0, %s34
    %s54 = sphi 0, %s54
    %s56 = sphi 0, %s54
    %s57 = sphi 0, %s56
    %s71 = sphi 0, %s57
    %s75 = sphi 0, %s75
    %s77 = sphi 0, %s75
    %s78 = sphi 0, %s77
    %s92 = sphi 0, %s78
    %s96 = sphi 0, %s96
    %s98 = sphi 0, %s96
    %s99 = sphi 0, %s98
    %s113 = sphi 0, %s99
    %s117 = sphi 0, %s117
    %s119 = sphi 0, %s117
    %s120 = sphi 0, %s119
    %s134 = sphi 0, %s120
    %s138 = sphi 0, %s138
    %s140 = sphi 0, %s138
    %s141 = sphi 0, %s140
    %s155 = sphi 0, %s141
    %s159 = sphi 0, %s159
    %s161 = sphi 0, %s159
    %s162 = sphi 0, %s161
    %s176 = sphi 0, %s162
    %s180 = sphi 0, %s180
    %s182 = sphi 0, %s180
    %s183 = sphi 0, %s182
    %s197 = sphi 0, %s183
    %s201 = sphi 0, %s201
    %s203 = sphi 0, %s201
    %s204 = sphi 0, %s203
    %s218 = sphi 0, %s204
    %s222 = sphi 0, %s222
    %s224 = sphi 0, %s222
    %s225 = sphi 0, %s224
    %s239 = sphi 0, %s225
    %s243 = sphi 0, %s243
    %s245 = sphi 0, %s243
    %s246 = sphi 0, %s245
    %s260 = sphi 0, %s246
    %s264 = sphi 0, %s264
    %s266 = sphi 0, %s264
    %s267 = sphi 0, %s266
    %s281 = sphi 0, %s267
    %s287 = sphi 0, %s289
    %s290 = sphi 0, %s287
    %s291 = sphi 0, %s290
    %s307 = sphi 0, %s291
    %s313 = sphi 0, %s315
    %s316 = sphi 0, %s313
    %s317 = sphi 0, %s316
    %s333 = sphi 0, %s317
  $region4: #{sp_swin_forward.1} parent=0 // loop_header_branch
    %23 = sbr.rel (%p21) target = $region8
  $region5: #{sp_swin_forward.1} parent=0 // loop_body
    %s25 = ssub.s32 %s20, 1
    %s26 = ssub.s32 %s20, 2
    %s27 = sadd.s32 %s20, 1
    %s28 = ssub.s32 %s20, %s27
    %p29 = scmp.eq.s32.totalorder %s28, 0
    %s31 = sadd.s32 %s30, 1
    %s32 = scalar_select %p29, %s30, %s31
    %p35 = pneg %p29
    %p36 = scmp.eq.s32.totalorder %s20, 1
    %p37 = por %p35, %p36
    %p38 = scmp.ne.s32.totalorder %s30, %s33
    %p39 = scmp.eq.s32.totalorder %s20, 0
    %p40 = por %p38, %p39
    %p41 = scmp.ne.s32.totalorder %s30, %s33
    %p42 = scmp.eq.s32.totalorder %s25, 1
    %p43 = por %p41, %p42
    %p44 = scmp.ne.s32.totalorder %s33, %s34
    %p45 = scmp.eq.s32.totalorder %s25, 0
    %p46 = por %p44, %p45
    %p47 = scmp.ne.s32.totalorder %s33, %s34
    %p48 = scmp.eq.s32.totalorder %s26, 1
    %p49 = por %p47, %p48
    %p51 = scmp.ne.s32.totalorder %s34, %s50
    %p52 = scmp.eq.s32.totalorder %s26, 0
    %p53 = por %p51, %p52
    %s55 = sadd.s32 %s54, 1
    %p58 = scmp.eq.s32.totalorder %s20, 1
    %p59 = scmp.ne.s32.totalorder %s54, %s56
    %p60 = scmp.eq.s32.totalorder %s20, 0
    %p61 = por %p59, %p60
    %p62 = scmp.ne.s32.totalorder %s54, %s56
    %p63 = scmp.eq.s32.totalorder %s25, 1
    %p64 = por %p62, %p63
    %p65 = scmp.ne.s32.totalorder %s56, %s57
    %p66 = scmp.eq.s32.totalorder %s25, 0
    %p67 = por %p65, %p66
    %p68 = scmp.ne.s32.totalorder %s56, %s57
    %p69 = scmp.eq.s32.totalorder %s26, 1
    %p70 = por %p68, %p69
    %p72 = scmp.ne.s32.totalorder %s57, %s71
    %p73 = scmp.eq.s32.totalorder %s26, 0
    %p74 = por %p72, %p73
    %s76 = sadd.s32 %s75, 1
    %p79 = scmp.eq.s32.totalorder %s20, 1
    %p80 = scmp.ne.s32.totalorder %s75, %s77
    %p81 = scmp.eq.s32.totalorder %s20, 0
    %p82 = por %p80, %p81
    %p83 = scmp.ne.s32.totalorder %s75, %s77
    %p84 = scmp.eq.s32.totalorder %s25, 1
    %p85 = por %p83, %p84
    %p86 = scmp.ne.s32.totalorder %s77, %s78
    %p87 = scmp.eq.s32.totalorder %s25, 0
    %p88 = por %p86, %p87
    %p89 = scmp.ne.s32.totalorder %s77, %s78
    %p90 = scmp.eq.s32.totalorder %s26, 1
    %p91 = por %p89, %p90
    %p93 = scmp.ne.s32.totalorder %s78, %s92
    %p94 = scmp.eq.s32.totalorder %s26, 0
    %p95 = por %p93, %p94
    %s97 = sadd.s32 %s96, 1
    %p100 = scmp.eq.s32.totalorder %s20, 1
    %p101 = scmp.ne.s32.totalorder %s96, %s98
    %p102 = scmp.eq.s32.totalorder %s20, 0
    %p103 = por %p101, %p102
    %p104 = scmp.ne.s32.totalorder %s96, %s98
    %p105 = scmp.eq.s32.totalorder %s25, 1
    %p106 = por %p104, %p105
    %p107 = scmp.ne.s32.totalorder %s98, %s99
    %p108 = scmp.eq.s32.totalorder %s25, 0
    %p109 = por %p107, %p108
    %p110 = scmp.ne.s32.totalorder %s98, %s99
    %p111 = scmp.eq.s32.totalorder %s26, 1
    %p112 = por %p110, %p111
    %p114 = scmp.ne.s32.totalorder %s99, %s113
    %p115 = scmp.eq.s32.totalorder %s26, 0
    %p116 = por %p114, %p115
    %s118 = sadd.s32 %s117, 1
    %p121 = scmp.eq.s32.totalorder %s20, 1
    %p122 = scmp.ne.s32.totalorder %s117, %s119
    %p123 = scmp.eq.s32.totalorder %s20, 0
    %p124 = por %p122, %p123
    %p125 = scmp.ne.s32.totalorder %s117, %s119
    %p126 = scmp.eq.s32.totalorder %s25, 1
    %p127 = por %p125, %p126
    %p128 = scmp.ne.s32.totalorder %s119, %s120
    %p129 = scmp.eq.s32.totalorder %s25, 0
    %p130 = por %p128, %p129
    %p131 = scmp.ne.s32.totalorder %s119, %s120
    %p132 = scmp.eq.s32.totalorder %s26, 1
    %p133 = por %p131, %p132
    %p135 = scmp.ne.s32.totalorder %s120, %s134
    %p136 = scmp.eq.s32.totalorder %s26, 0
    %p137 = por %p135, %p136
    %s139 = sadd.s32 %s138, 1
    %p142 = scmp.eq.s32.totalorder %s20, 1
    %p143 = scmp.ne.s32.totalorder %s138, %s140
    %p144 = scmp.eq.s32.totalorder %s20, 0
    %p145 = por %p143, %p144
    %p146 = scmp.ne.s32.totalorder %s138, %s140
    %p147 = scmp.eq.s32.totalorder %s25, 1
    %p148 = por %p146, %p147
    %p149 = scmp.ne.s32.totalorder %s140, %s141
    %p150 = scmp.eq.s32.totalorder %s25, 0
    %p151 = por %p149, %p150
    %p152 = scmp.ne.s32.totalorder %s140, %s141
    %p153 = scmp.eq.s32.totalorder %s26, 1
    %p154 = por %p152, %p153
    %p156 = scmp.ne.s32.totalorder %s141, %s155
    %p157 = scmp.eq.s32.totalorder %s26, 0
    %p158 = por %p156, %p157
    %s160 = sadd.s32 %s159, 1
    %p163 = scmp.eq.s32.totalorder %s20, 1
    %p164 = scmp.ne.s32.totalorder %s159, %s161
    %p165 = scmp.eq.s32.totalorder %s20, 0
    %p166 = por %p164, %p165
    %p167 = scmp.ne.s32.totalorder %s159, %s161
    %p168 = scmp.eq.s32.totalorder %s25, 1
    %p169 = por %p167, %p168
    %p170 = scmp.ne.s32.totalorder %s161, %s162
    %p171 = scmp.eq.s32.totalorder %s25, 0
    %p172 = por %p170, %p171
    %p173 = scmp.ne.s32.totalorder %s161, %s162
    %p174 = scmp.eq.s32.totalorder %s26, 1
    %p175 = por %p173, %p174
    %p177 = scmp.ne.s32.totalorder %s162, %s176
    %p178 = scmp.eq.s32.totalorder %s26, 0
    %p179 = por %p177, %p178
    %s181 = sadd.s32 %s180, 1
    %p184 = scmp.eq.s32.totalorder %s20, 1
    %p185 = scmp.ne.s32.totalorder %s180, %s182
    %p186 = scmp.eq.s32.totalorder %s20, 0
    %p187 = por %p185, %p186
    %p188 = scmp.ne.s32.totalorder %s180, %s182
    %p189 = scmp.eq.s32.totalorder %s25, 1
    %p190 = por %p188, %p189
    %p191 = scmp.ne.s32.totalorder %s182, %s183
    %p192 = scmp.eq.s32.totalorder %s25, 0
    %p193 = por %p191, %p192
    %p194 = scmp.ne.s32.totalorder %s182, %s183
    %p195 = scmp.eq.s32.totalorder %s26, 1
    %p196 = por %p194, %p195
    %p198 = scmp.ne.s32.totalorder %s183, %s197
    %p199 = scmp.eq.s32.totalorder %s26, 0
    %p200 = por %p198, %p199
    %s202 = sadd.s32 %s201, 1
    %p205 = scmp.eq.s32.totalorder %s20, 1
    %p206 = scmp.ne.s32.totalorder %s201, %s203
    %p207 = scmp.eq.s32.totalorder %s20, 0
    %p208 = por %p206, %p207
    %p209 = scmp.ne.s32.totalorder %s201, %s203
    %p210 = scmp.eq.s32.totalorder %s25, 1
    %p211 = por %p209, %p210
    %p212 = scmp.ne.s32.totalorder %s203, %s204
    %p213 = scmp.eq.s32.totalorder %s25, 0
    %p214 = por %p212, %p213
    %p215 = scmp.ne.s32.totalorder %s203, %s204
    %p216 = scmp.eq.s32.totalorder %s26, 1
    %p217 = por %p215, %p216
    %p219 = scmp.ne.s32.totalorder %s204, %s218
    %p220 = scmp.eq.s32.totalorder %s26, 0
    %p221 = por %p219, %p220
    %s223 = sadd.s32 %s222, 1
    %p226 = scmp.eq.s32.totalorder %s20, 1
    %p227 = scmp.ne.s32.totalorder %s222, %s224
    %p228 = scmp.eq.s32.totalorder %s20, 0
    %p229 = por %p227, %p228
    %p230 = scmp.ne.s32.totalorder %s222, %s224
    %p231 = scmp.eq.s32.totalorder %s25, 1
    %p232 = por %p230, %p231
    %p233 = scmp.ne.s32.totalorder %s224, %s225
    %p234 = scmp.eq.s32.totalorder %s25, 0
    %p235 = por %p233, %p234
    %p236 = scmp.ne.s32.totalorder %s224, %s225
    %p237 = scmp.eq.s32.totalorder %s26, 1
    %p238 = por %p236, %p237
    %p240 = scmp.ne.s32.totalorder %s225, %s239
    %p241 = scmp.eq.s32.totalorder %s26, 0
    %p242 = por %p240, %p241
    %s244 = sadd.s32 %s243, 1
    %p247 = scmp.eq.s32.totalorder %s20, 1
    %p248 = scmp.ne.s32.totalorder %s243, %s245
    %p249 = scmp.eq.s32.totalorder %s20, 0
    %p250 = por %p248, %p249
    %p251 = scmp.ne.s32.totalorder %s243, %s245
    %p252 = scmp.eq.s32.totalorder %s25, 1
    %p253 = por %p251, %p252
    %p254 = scmp.ne.s32.totalorder %s245, %s246
    %p255 = scmp.eq.s32.totalorder %s25, 0
    %p256 = por %p254, %p255
    %p257 = scmp.ne.s32.totalorder %s245, %s246
    %p258 = scmp.eq.s32.totalorder %s26, 1
    %p259 = por %p257, %p258
    %p261 = scmp.ne.s32.totalorder %s246, %s260
    %p262 = scmp.eq.s32.totalorder %s26, 0
    %p263 = por %p261, %p262
    %s265 = sadd.s32 %s264, 1
    %p268 = scmp.eq.s32.totalorder %s20, 1
    %p269 = scmp.ne.s32.totalorder %s264, %s266
    %p270 = scmp.eq.s32.totalorder %s20, 0
    %p271 = por %p269, %p270
    %p272 = scmp.ne.s32.totalorder %s264, %s266
    %p273 = scmp.eq.s32.totalorder %s25, 1
    %p274 = por %p272, %p273
    %p275 = scmp.ne.s32.totalorder %s266, %s267
    %p276 = scmp.eq.s32.totalorder %s25, 0
    %p277 = por %p275, %p276
    %p278 = scmp.ne.s32.totalorder %s266, %s267
    %p279 = scmp.eq.s32.totalorder %s26, 1
    %p280 = por %p278, %p279
    %p282 = scmp.ne.s32.totalorder %s267, %s281
    %p283 = scmp.eq.s32.totalorder %s26, 0
    %p284 = por %p282, %p283
    %s285 = ssub.s32 %s20, %s27
    %p286 = scmp.eq.s32.totalorder %s285, 0
    %s288 = sadd.s32 %s287, 1
    %s289 = scalar_select %p286, %s287, %s288
    %p292 = pneg %p286
    %p293 = scmp.eq.s32.totalorder %s20, 1
    %p294 = por %p292, %p293
    %p295 = scmp.ne.s32.totalorder %s287, %s290
    %p296 = scmp.eq.s32.totalorder %s20, 0
    %p297 = por %p295, %p296
    %p298 = scmp.ne.s32.totalorder %s287, %s290
    %p299 = scmp.eq.s32.totalorder %s25, 1
    %p300 = por %p298, %p299
    %p301 = scmp.ne.s32.totalorder %s290, %s291
    %p302 = scmp.eq.s32.totalorder %s25, 0
    %p303 = por %p301, %p302
    %p304 = scmp.ne.s32.totalorder %s290, %s291
    %p305 = scmp.eq.s32.totalorder %s26, 1
    %p306 = por %p304, %p305
    %p308 = scmp.ne.s32.totalorder %s291, %s307
    %p309 = scmp.eq.s32.totalorder %s26, 0
    %p310 = por %p308, %p309
    %s311 = ssub.s32 %s20, %s27
    %p312 = scmp.eq.s32.totalorder %s311, 0
    %s314 = sadd.s32 %s313, 1
    %s315 = scalar_select %p312, %s313, %s314
    %p318 = pneg %p312
    %p319 = scmp.eq.s32.totalorder %s20, 1
    %p320 = por %p318, %p319
    %p321 = scmp.ne.s32.totalorder %s313, %s316
    %p322 = scmp.eq.s32.totalorder %s20, 0
    %p323 = por %p321, %p322
    %p324 = scmp.ne.s32.totalorder %s313, %s316
    %p325 = scmp.eq.s32.totalorder %s25, 1
    %p326 = por %p324, %p325
    %p327 = scmp.ne.s32.totalorder %s316, %s317
    %p328 = scmp.eq.s32.totalorder %s25, 0
    %p329 = por %p327, %p328
    %p330 = scmp.ne.s32.totalorder %s316, %s317
    %p331 = scmp.eq.s32.totalorder %s26, 1
    %p332 = por %p330, %p331
    %p334 = scmp.ne.s32.totalorder %s317, %s333
    %p335 = scmp.eq.s32.totalorder %s26, 0
    %p336 = por %p334, %p335
    %p337 = scmp.le.s32.totalorder 1, %s20
    %p338 = scmp.lt.s32.totalorder %s20, 3
    %p339 = pnand %p337, %p338
    %p340 = pneg %p339
    // Predicated region
    $region9: #{sp_swin_forward.1} parent=5 // pred_check
      _
    $region10: #{sp_swin_forward.1} parent=5 // pred_check_branch
      %342 = sbr.rel (%p339) target = $region12
    $region11: #{sp_swin_forward.1} parent=5 // pred_region
      %s343 = ssub.s32 %s20, 1
      // Predicated region
      $region13: #{sp_swin_forward.1} parent=11 // pred_check
        %p344 = pneg %p67
      $region14: #{sp_swin_forward.1} parent=11 // pred_check_branch
        %346 = sbr.rel (%p344) target = $region16
      $region15: #{sp_swin_forward.1} parent=11 // pred_region
        _
      $region16: #{sp_swin_forward.1} parent=11 // pred_fallthru
        _
      // Predicated region
      $region17: #{sp_swin_forward.1} parent=11 // pred_check
        %p347 = pneg %p88
      $region18: #{sp_swin_forward.1} parent=11 // pred_check_branch
        %349 = sbr.rel (%p347) target = $region20
      $region19: #{sp_swin_forward.1} parent=11 // pred_region
        _
      $region20: #{sp_swin_forward.1} parent=11 // pred_fallthru
        _
      // Predicated region
      $region21: #{sp_swin_forward.1} parent=11 // pred_check
        %p350 = pneg %p109
      $region22: #{sp_swin_forward.1} parent=11 // pred_check_branch
        %352 = sbr.rel (%p350) target = $region24
      $region23: #{sp_swin_forward.1} parent=11 // pred_region
        _
      $region24: #{sp_swin_forward.1} parent=11 // pred_fallthru
        _
      // Predicated region
      $region25: #{sp_swin_forward.1} parent=11 // pred_check
        %p353 = pneg %p130
      $region26: #{sp_swin_forward.1} parent=11 // pred_check_branch
        %355 = sbr.rel (%p353) target = $region28
      $region27: #{sp_swin_forward.1} parent=11 // pred_region
        _
      $region28: #{sp_swin_forward.1} parent=11 // pred_fallthru
        _
      // Predicated region
      $region29: #{sp_swin_forward.1} parent=11 // pred_check
        %p356 = pneg %p151
      $region30: #{sp_swin_forward.1} parent=11 // pred_check_branch
        %358 = sbr.rel (%p356) target = $region32
      $region31: #{sp_swin_forward.1} parent=11 // pred_region
        _
      $region32: #{sp_swin_forward.1} parent=11 // pred_fallthru
        _
      // Predicated region
      $region33: #{sp_swin_forward.1} parent=11 // pred_check
        %p359 = pneg %p172
      $region34: #{sp_swin_forward.1} parent=11 // pred_check_branch
        %361 = sbr.rel (%p359) target = $region36
      $region35: #{sp_swin_forward.1} parent=11 // pred_region
        _
      $region36: #{sp_swin_forward.1} parent=11 // pred_fallthru
        _
      // Predicated region
      $region37: #{sp_swin_forward.1} parent=11 // pred_check
        %p362 = pneg %p193
      $region38: #{sp_swin_forward.1} parent=11 // pred_check_branch
        %364 = sbr.rel (%p362) target = $region40
      $region39: #{sp_swin_forward.1} parent=11 // pred_region
        _
      $region40: #{sp_swin_forward.1} parent=11 // pred_fallthru
        _
      // Predicated region
      $region41: #{sp_swin_forward.1} parent=11 // pred_check
        %p365 = pneg %p214
      $region42: #{sp_swin_forward.1} parent=11 // pred_check_branch
        %367 = sbr.rel (%p365) target = $region44
      $region43: #{sp_swin_forward.1} parent=11 // pred_region
        _
      $region44: #{sp_swin_forward.1} parent=11 // pred_fallthru
        _
      // Predicated region
      $region45: #{sp_swin_forward.1} parent=11 // pred_check
        %p368 = pneg %p235
      $region46: #{sp_swin_forward.1} parent=11 // pred_check_branch
        %370 = sbr.rel (%p368) target = $region48
      $region47: #{sp_swin_forward.1} parent=11 // pred_region
        _
      $region48: #{sp_swin_forward.1} parent=11 // pred_fallthru
        _
      // Predicated region
      $region49: #{sp_swin_forward.1} parent=11 // pred_check
        %p371 = pneg %p256
      $region50: #{sp_swin_forward.1} parent=11 // pred_check_branch
        %373 = sbr.rel (%p371) target = $region52
      $region51: #{sp_swin_forward.1} parent=11 // pred_region
        _
      $region52: #{sp_swin_forward.1} parent=11 // pred_fallthru
        _
      // Predicated region
      $region53: #{sp_swin_forward.1} parent=11 // pred_check
        %p374 = pneg %p277
      $region54: #{sp_swin_forward.1} parent=11 // pred_check_branch
        %376 = sbr.rel (%p374) target = $region56
      $region55: #{sp_swin_forward.1} parent=11 // pred_region
        _
      $region56: #{sp_swin_forward.1} parent=11 // pred_fallthru
        _
    $region12: #{sp_swin_forward.1} parent=5 // pred_fallthru
      _
    %p377 = scmp.lt.s32.totalorder %s20, 2
    // Predicated region
    $region57: #{sp_swin_forward.1} parent=5 // pred_check
      %p378 = pneg %p377
    $region58: #{sp_swin_forward.1} parent=5 // pred_check_branch
      %380 = sbr.rel (%p378) target = $region60
    $region59: #{sp_swin_forward.1} parent=5 // pred_region
      // Predicated region
      $region61: #{sp_swin_forward.1} parent=59 // pred_check
        %p381 = pneg %p40
      $region62: #{sp_swin_forward.1} parent=59 // pred_check_branch
        %383 = sbr.rel (%p381) target = $region64
      $region63: #{sp_swin_forward.1} parent=59 // pred_region
        %p384 = scmp.lt.s32.totalorder %s20, 1
        %s385 = scalar_select %p384, %s20, 1
        %s386 = smul.addr %s385, 18
        %s387 = smul.addr %s386, 8
        %s388 = scalar_lea.vmem %s0, %s387
      $region64: #{sp_swin_forward.1} parent=59 // pred_fallthru
        _
    $region60: #{sp_swin_forward.1} parent=5 // pred_fallthru
      _
    %p389 = scmp.le.s32.totalorder 1, %s20
    %p390 = scmp.lt.s32.totalorder %s20, 3
    %p391 = pnand %p389, %p390
    %p392 = pneg %p391
    // Predicated region
    $region65: #{sp_swin_forward.1} parent=5 // pred_check
      _
    $region66: #{sp_swin_forward.1} parent=5 // pred_check_branch
      %394 = sbr.rel (%p391) target = $region68
    $region67: #{sp_swin_forward.1} parent=5 // pred_region
      %s395 = ssub.s32 %s20, 1
      %p396 = scmp.lt.s32.totalorder %s25, 1
      %s397 = scalar_select %p396, %s25, 1
      %s398 = smul.addr %s397, 18
      %s399 = smul.addr %s398, 8
      %s400 = scalar_lea.vmem %s0, %s399
      %p401 = pneg %p46
      %p402 = pneg %p43
      %p403 = pneg %p67
      %p404 = pneg %p64
      %p405 = pneg %p88
      %p406 = pneg %p85
      %p407 = pneg %p109
      %p408 = pneg %p106
      %p409 = pneg %p130
      %p410 = pneg %p127
      %p411 = pneg %p151
      %p412 = pneg %p148
      %p413 = pneg %p172
      %p414 = pneg %p169
      %p415 = pneg %p193
      %p416 = pneg %p190
      %p417 = pneg %p214
      %p418 = pneg %p211
      %p419 = pneg %p235
      %p420 = pneg %p232
      %p421 = pneg %p256
      %p422 = pneg %p253
      %p423 = pneg %p277
      %p424 = pneg %p274
      %p425 = pneg %p303
      %p426 = pneg %p300
      %p427 = scmp.lt.s32.totalorder %s25, 1
      %s428 = scalar_select %p427, %s25, 1
      %s429 = smul.addr %s428, 4
      %s430 = scalar_lea.vmem %s12, %s429
      %p431 = pneg %p329
      %p432 = pneg %p326
      %p433 = scmp.lt.s32.totalorder %s25, 1
      %s434 = scalar_select %p433, %s25, 1
      %s435 = smul.addr %s434, 4
      %s436 = scalar_lea.vmem %s13, %s435
      %p437 = scmp.lt.s32.totalorder %s25, 1
      %s438 = scalar_select %p437, %s25, 1
      %s439 = smul.addr %s438, 18
      %s440 = smul.addr %s439, 8
      %s441 = scalar_lea.vmem %s0, %s440
      %p442 = scmp.lt.s32.totalorder %s25, 1
      %s443 = scalar_select %p442, %s25, 1
      %s444 = smul.addr %s443, 4
      %s445 = scalar_lea.vmem %s12, %s444
      %p446 = scmp.lt.s32.totalorder %s25, 1
      %s447 = scalar_select %p446, %s25, 1
      %s448 = smul.addr %s447, 4
      %s449 = scalar_lea.vmem %s13, %s448
      %v450 = vld [vmem:[%s441] sm:$0xff]
      %v451 = vld [vmem:[%s441 + $0x8] sm:$0xff]
      %v452 = vld [vmem:[%s441 + $0x10] sm:$0xff]
      %v453 = vld [vmem:[%s441 + $0x18] sm:$0xff]
      %v454 = vld [vmem:[%s441 + $0x20] sm:$0xff]
      %v455 = vld [vmem:[%s441 + $0x28] sm:$0xff]
      %v456 = vld [vmem:[%s441 + $0x30] sm:$0xff]
      %v457 = vld [vmem:[%s441 + $0x38] sm:$0xff]
      %v458 = vld [vmem:[%s441 + $0x40] sm:$0xff]
      %v459 = vld [vmem:[%s441 + $0x48] sm:$0xff]
      %v460 = vld [vmem:[%s441 + $0x50] sm:$0xff]
      %v461 = vld [vmem:[%s441 + $0x58] sm:$0xff]
      %v462 = vld [vmem:[%s441 + $0x60] sm:$0xff]
      %v463 = vld [vmem:[%s441 + $0x68] sm:$0xff]
      %v464 = vld [vmem:[%s441 + $0x70] sm:$0xff]
      %v465 = vld [vmem:[%s441 + $0x78] sm:$0xff]
      %v466 = vld [vmem:[%s441 + $0x80] sm:$0xff]
      %v467 = vld [vmem:[%s441 + $0x88] sm:$0xff]
      %v468 = vld [vmem:[%s1] sm:$0xff]
      %v469 = vld [vmem:[%s1 + $0x8] sm:$0xf]
      %v470 = vld [vmem:[%s2] sm:$0x1]
      %v472 = vlaneseq
      %v473 = vshrl.u32 %v472, 7
      %v474 = vsub.s32 0, %v473
      %v475 = vrot.slane %v470, %v474
      %vm477 = vcmask 97280
      %v479 = vsel %vm477, %v450, 0
      %v482 = vsel %vm477, %v451, 0
      %v485 = vsel %vm477, %v452, 0
      %v488 = vsel %vm477, %v453, 0
      %v491 = vsel %vm477, %v454, 0
      %v494 = vsel %vm477, %v455, 0
      %v497 = vsel %vm477, %v456, 0
      %v500 = vsel %vm477, %v457, 0
      %v503 = vsel %vm477, %v458, 0
      %v506 = vsel %vm477, %v459, 0
      %v509 = vsel %vm477, %v460, 0
      %v512 = vsel %vm477, %v461, 0
      %v515 = vsel %vm477, %v462, 0
      %v518 = vsel %vm477, %v463, 0
      %v521 = vsel %vm477, %v464, 0
      %v524 = vsel %vm477, %v465, 0
      %v527 = vsel %vm477, %v466, 0
      %v530 = vsel %vm477, %v467, 0
      %vm532 = vcmask 1043456
      %v534 = vsel %vm532, %v469, 0
      %536 = vmatprep.subr.mxu0 0.0
      %537 = vmatpush1.msra.mxu0 %v468
      %538 = vmatprep.subr.mxu0 0.0
      %539 = vmatpush1.msra.mxu0 %v534
      %540 = vmatprep.subr.mxu0 0.0
      %541 = vmatpush1.msra.mxu0 0.0
      %542 = vmatprep.subr.mxu0 0.0
      %543 = vmatpush1.msra.mxu0 0.0
      %544 = vmatprep.subr.mxu0 0.0
      %545 = vmatpush1.msra.mxu0 0.0
      %546 = vmatprep.subr.mxu0 0.0
      %547 = vmatpush1.msra.mxu0 0.0
      %548 = vmatprep.subr.mxu0 0.0
      %549 = vmatpush1.msra.mxu0 0.0
      %550 = vmatprep.subr.mxu0 0.0
      %551 = vmatpush1.msra.mxu0 0.0
      %552 = vmatprep.subr.mxu0 0.0
      %553 = vmatpush1.msra.mxu0 0.0
      %554 = vmatprep.subr.mxu0 0.0
      %555 = vmatpush1.msra.mxu0 0.0
      %556 = vmatprep.subr.mxu0 0.0
      %557 = vmatpush1.msra.mxu0 0.0
      %558 = vmatprep.subr.mxu0 0.0
      %559 = vmatpush1.msra.mxu0 0.0
      %560 = vmatprep.subr.mxu0 0.0
      %561 = vmatpush1.msra.mxu0 0.0
      %562 = vmatprep.subr.mxu0 0.0
      %563 = vmatpush1.msra.mxu0 0.0
      %564 = vmatprep.subr.mxu0 0.0
      %565 = vmatpush1.msra.mxu0 0.0
      %566 = vmatprep.subr.mxu0 0.0
      %567 = vmatpush1.msra.mxu0 0.0
      %568 = vmatprep.subr.mxu0 0.0
      %569 = vmatpush1.msra.mxu0 0.0
      %570 = vmatprep.subr.mxu0 0.0
      %571 = vmatpush1.msra.mxu0 0.0
      %572 = vmatprep.subr.mxu0 0.0
      %573 = vmatpush1.msra.mxu0 0.0
      %574 = vmatprep.subr.mxu0 0.0
      %575 = vmatpush1.msra.mxu0 0.0
      %576 = vmatprep.subr.mxu0 0.0
      %577 = vmatpush1.msra.mxu0 0.0
      %578 = vmatprep.subr.mxu0 0.0
      %579 = vmatpush1.msra.mxu0 0.0
      %580 = vmatprep.subr.mxu0 0.0
      %581 = vmatpush1.msra.mxu0 0.0
      %582 = vmatprep.subr.mxu0 0.0
      %583 = vmatpush1.msra.mxu0 0.0
      %584 = vmatprep.subr.mxu0 0.0
      %585 = vmatpush1.msra.mxu0 0.0
      %586 = vmatprep.subr.mxu0 0.0
      %587 = vmatpush1.msra.mxu0 0.0
      %588 = vmatprep.subr.mxu0 0.0
      %589 = vmatpush1.msra.mxu0 0.0
      %590 = vmatprep.subr.mxu0 0.0
      %591 = vmatpush1.msra.mxu0 0.0
      %592 = vmatprep.subr.mxu0 0.0
      %593 = vmatpush1.msra.mxu0 0.0
      %594 = vmatprep.subr.mxu0 0.0
      %595 = vmatpush1.msra.mxu0 0.0
      %596 = vmatprep.subr.mxu0 0.0
      %597 = vmatpush1.msra.mxu0 0.0
      %598 = vmatprep.subr.mxu0 0.0
      %599 = vmatpush1.msra.mxu0 0.0
      %600 = vmatprep.mubr.f32.mxu0 0.0
      %601 = vmatmul.mubr.f32.gmra.mrb[0].mxu0 %v479
      %v602 = vpop.f32.mrb[0].mxu0
      %v603 = vadd.f32 %v475, %v602
      %v604 = vpop.f32.mrb[0].mxu0
      %605 = vmatprep.mubr.f32.mxu0 0.0
      %606 = vmatmul.mubr.f32.gmra.mrb[0].mxu0 %v482
      %v607 = vpop.f32.mrb[0].mxu0
      %v608 = vadd.f32 %v475, %v607
      %v609 = vpop.f32.mrb[0].mxu0
      %610 = vmatprep.mubr.f32.mxu0 0.0
      %611 = vmatmul.mubr.f32.gmra.mrb[0].mxu0 %v485
      %v612 = vpop.f32.mrb[0].mxu0
      %v613 = vadd.f32 %v475, %v612
      %v614 = vpop.f32.mrb[0].mxu0
      %615 = vmatprep.mubr.f32.mxu0 0.0
      %616 = vmatmul.mubr.f32.gmra.mrb[0].mxu0 %v488
      %v617 = vpop.f32.mrb[0].mxu0
      %v618 = vadd.f32 %v475, %v617
      %v619 = vpop.f32.mrb[0].mxu0
      %620 = vmatprep.mubr.f32.mxu0 0.0
      %621 = vmatmul.mubr.f32.gmra.mrb[0].mxu0 %v491
      %v622 = vpop.f32.mrb[0].mxu0
      %v623 = vadd.f32 %v475, %v622
      %v624 = vpop.f32.mrb[0].mxu0
      %625 = vmatprep.mubr.f32.mxu0 0.0
      %626 = vmatmul.mubr.f32.gmra.mrb[0].mxu0 %v494
      %v627 = vpop.f32.mrb[0].mxu0
      %v628 = vadd.f32 %v475, %v627
      %v629 = vpop.f32.mrb[0].mxu0
      %630 = vmatprep.mubr.f32.mxu0 0.0
      %631 = vmatmul.mubr.f32.gmra.mrb[0].mxu0 %v497
      %v632 = vpop.f32.mrb[0].mxu0
      %v633 = vadd.f32 %v475, %v632
      %v634 = vpop.f32.mrb[0].mxu0
      %635 = vmatprep.mubr.f32.mxu0 0.0
      %636 = vmatmul.mubr.f32.gmra.mrb[0].mxu0 %v500
      %v637 = vpop.f32.mrb[0].mxu0
      %v638 = vadd.f32 %v475, %v637
      %v639 = vpop.f32.mrb[0].mxu0
      %640 = vmatprep.mubr.f32.mxu0 0.0
      %641 = vmatmul.mubr.f32.gmra.mrb[0].mxu0 %v503
      %v642 = vpop.f32.mrb[0].mxu0
      %v643 = vadd.f32 %v475, %v642
      %v644 = vpop.f32.mrb[0].mxu0
      %645 = vmatprep.mubr.f32.mxu0 0.0
      %646 = vmatmul.mubr.f32.gmra.mrb[0].mxu0 %v506
      %v647 = vpop.f32.mrb[0].mxu0
      %v648 = vadd.f32 %v475, %v647
      %v649 = vpop.f32.mrb[0].mxu0
      %650 = vmatprep.mubr.f32.mxu0 0.0
      %651 = vmatmul.mubr.f32.gmra.mrb[0].mxu0 %v509
      %v652 = vpop.f32.mrb[0].mxu0
      %v653 = vadd.f32 %v475, %v652
      %v654 = vpop.f32.mrb[0].mxu0
      %655 = vmatprep.mubr.f32.mxu0 0.0
      %656 = vmatmul.mubr.f32.gmra.mrb[0].mxu0 %v512
      %v657 = vpop.f32.mrb[0].mxu0
      %v658 = vadd.f32 %v475, %v657
      %v659 = vpop.f32.mrb[0].mxu0
      %660 = vmatprep.mubr.f32.mxu0 0.0
      %661 = vmatmul.mubr.f32.gmra.mrb[0].mxu0 %v515
      %v662 = vpop.f32.mrb[0].mxu0
      %v663 = vadd.f32 %v475, %v662
      %v664 = vpop.f32.mrb[0].mxu0
      %665 = vmatprep.mubr.f32.mxu0 0.0
      %666 = vmatmul.mubr.f32.gmra.mrb[0].mxu0 %v518
      %v667 = vpop.f32.mrb[0].mxu0
      %v668 = vadd.f32 %v475, %v667
      %v669 = vpop.f32.mrb[0].mxu0
      %670 = vmatprep.mubr.f32.mxu0 0.0
      %671 = vmatmul.mubr.f32.gmra.mrb[0].mxu0 %v521
      %v672 = vpop.f32.mrb[0].mxu0
      %v673 = vadd.f32 %v475, %v672
      %v674 = vpop.f32.mrb[0].mxu0
      %675 = vmatprep.mubr.f32.mxu0 0.0
      %676 = vmatmul.mubr.f32.gmra.mrb[0].mxu0 %v524
      %v677 = vpop.f32.mrb[0].mxu0
      %v678 = vadd.f32 %v475, %v677
      %v679 = vpop.f32.mrb[0].mxu0
      %680 = vmatprep.mubr.f32.mxu0 0.0
      %681 = vmatmul.mubr.f32.gmra.mrb[0].mxu0 %v527
      %v682 = vpop.f32.mrb[0].mxu0
      %v683 = vadd.f32 %v475, %v682
      %v684 = vpop.f32.mrb[0].mxu0
      %685 = vmatprep.mubr.f32.mxu0 0.0
      %686 = vmatmul.mubr.f32.gmra.mrb[0].mxu0 %v530
      %v687 = vpop.f32.mrb[0].mxu0
      %v688 = vadd.f32 %v475, %v687
      %v689 = vpop.f32.mrb[0].mxu0
      %690 = vdwg.mxu0
      %v691 = vld [vmem:[%s3] sm:$0xff]
      %v692 = vld [vmem:[%s3 + $0x8] sm:$0xf]
      %v693 = vld [vmem:[%s4] sm:$0x1]
      %v695 = vlaneseq
      %v696 = vshrl.u32 %v695, 7
      %v697 = vsub.s32 0, %v696
      %v698 = vrot.slane %v693, %v697
      %v701 = vsel %vm532, %v692, 0
      %703 = vmatprep.subr.mxu0 0.0
      %704 = vmatpush1.msra.mxu0 %v691
      %705 = vmatprep.subr.mxu0 0.0
      %706 = vmatpush1.msra.mxu0 %v701
      %707 = vmatprep.subr.mxu0 0.0
      %708 = vmatpush1.msra.mxu0 0.0
      %709 = vmatprep.subr.mxu0 0.0
      %710 = vmatpush1.msra.mxu0 0.0
      %711 = vmatprep.subr.mxu0 0.0
      %712 = vmatpush1.msra.mxu0 0.0
      %713 = vmatprep.subr.mxu0 0.0
      %714 = vmatpush1.msra.mxu0 0.0
      %715 = vmatprep.subr.mxu0 0.0
      %716 = vmatpush1.msra.mxu0 0.0
      %717 = vmatprep.subr.mxu0 0.0
      %718 = vmatpush1.msra.mxu0 0.0
      %719 = vmatprep.subr.mxu0 0.0
      %720 = vmatpush1.msra.mxu0 0.0
      %721 = vmatprep.subr.mxu0 0.0
      %722 = vmatpush1.msra.mxu0 0.0
      %723 = vmatprep.subr.mxu0 0.0
      %724 = vmatpush1.msra.mxu0 0.0
      %725 = vmatprep.subr.mxu0 0.0
      %726 = vmatpush1.msra.mxu0 0.0
      %727 = vmatprep.subr.mxu0 0.0
      %728 = vmatpush1.msra.mxu0 0.0
      %729 = vmatprep.subr.mxu0 0.0
      %730 = vmatpush1.msra.mxu0 0.0
      %731 = vmatprep.subr.mxu0 0.0
      %732 = vmatpush1.msra.mxu0 0.0
      %733 = vmatprep.subr.mxu0 0.0
      %734 = vmatpush1.msra.mxu0 0.0
      %735 = vmatprep.subr.mxu0 0.0
      %736 = vmatpush1.msra.mxu0 0.0
      %737 = vmatprep.subr.mxu0 0.0
      %738 = vmatpush1.msra.mxu0 0.0
      %739 = vmatprep.subr.mxu0 0.0
      %740 = vmatpush1.msra.mxu0 0.0
      %741 = vmatprep.subr.mxu0 0.0
      %742 = vmatpush1.msra.mxu0 0.0
      %743 = vmatprep.subr.mxu0 0.0
      %744 = vmatpush1.msra.mxu0 0.0
      %745 = vmatprep.subr.mxu0 0.0
      %746 = vmatpush1.msra.mxu0 0.0
      %747 = vmatprep.subr.mxu0 0.0
      %748 = vmatpush1.msra.mxu0 0.0
      %749 = vmatprep.subr.mxu0 0.0
      %750 = vmatpush1.msra.mxu0 0.0
      %751 = vmatprep.subr.mxu0 0.0
      %752 = vmatpush1.msra.mxu0 0.0
      %753 = vmatprep.subr.mxu0 0.0
      %754 = vmatpush1.msra.mxu0 0.0
      %755 = vmatprep.subr.mxu0 0.0
      %756 = vmatpush1.msra.mxu0 0.0
      %757 = vmatprep.subr.mxu0 0.0
      %758 = vmatpush1.msra.mxu0 0.0
      %759 = vmatprep.subr.mxu0 0.0
      %760 = vmatpush1.msra.mxu0 0.0
      %761 = vmatprep.subr.mxu0 0.0
      %762 = vmatpush1.msra.mxu0 0.0
      %763 = vmatprep.subr.mxu0 0.0
      %764 = vmatpush1.msra.mxu0 0.0
      %765 = vmatprep.subr.mxu0 0.0
      %766 = vmatpush1.msra.mxu0 0.0
      %767 = vmatprep.mubr.f32.mxu0 0.0
      %768 = vmatmul.mubr.f32.gmra.mrb[0].mxu0 %v479
      %v769 = vpop.f32.mrb[0].mxu0
      %v770 = vadd.f32 %v698, %v769
      %v771 = vpop.f32.mrb[0].mxu0
      %772 = vmatprep.mubr.f32.mxu0 0.0
      %773 = vmatmul.mubr.f32.gmra.mrb[0].mxu0 %v482
      %v774 = vpop.f32.mrb[0].mxu0
      %v775 = vadd.f32 %v698, %v774
      %v776 = vpop.f32.mrb[0].mxu0
      %777 = vmatprep.mubr.f32.mxu0 0.0
      %778 = vmatmul.mubr.f32.gmra.mrb[0].mxu0 %v485
      %v779 = vpop.f32.mrb[0].mxu0
      %v780 = vadd.f32 %v698, %v779
      %v781 = vpop.f32.mrb[0].mxu0
      %782 = vmatprep.mubr.f32.mxu0 0.0
      %783 = vmatmul.mubr.f32.gmra.mrb[0].mxu0 %v488
      %v784 = vpop.f32.mrb[0].mxu0
      %v785 = vadd.f32 %v698, %v784
      %v786 = vpop.f32.mrb[0].mxu0
      %787 = vmatprep.mubr.f32.mxu0 0.0
      %788 = vmatmul.mubr.f32.gmra.mrb[0].mxu0 %v491
      %v789 = vpop.f32.mrb[0].mxu0
      %v790 = vadd.f32 %v698, %v789
      %v791 = vpop.f32.mrb[0].mxu0
      %792 = vmatprep.mubr.f32.mxu0 0.0
      %793 = vmatmul.mubr.f32.gmra.mrb[0].mxu0 %v494
      %v794 = vpop.f32.mrb[0].mxu0
      %v795 = vadd.f32 %v698, %v794
      %v796 = vpop.f32.mrb[0].mxu0
      %797 = vmatprep.mubr.f32.mxu0 0.0
      %798 = vmatmul.mubr.f32.gmra.mrb[0].mxu0 %v497
      %v799 = vpop.f32.mrb[0].mxu0
      %v800 = vadd.f32 %v698, %v799
      %v801 = vpop.f32.mrb[0].mxu0
      %802 = vmatprep.mubr.f32.mxu0 0.0
      %803 = vmatmul.mubr.f32.gmra.mrb[0].mxu0 %v500
      %v804 = vpop.f32.mrb[0].mxu0
      %v805 = vadd.f32 %v698, %v804
      %v806 = vpop.f32.mrb[0].mxu0
      %807 = vmatprep.mubr.f32.mxu0 0.0
      %808 = vmatmul.mubr.f32.gmra.mrb[0].mxu0 %v503
      %v809 = vpop.f32.mrb[0].mxu0
      %v810 = vadd.f32 %v698, %v809
      %v811 = vpop.f32.mrb[0].mxu0
      %812 = vmatprep.mubr.f32.mxu0 0.0
      %813 = vmatmul.mubr.f32.gmra.mrb[0].mxu0 %v506
      %v814 = vpop.f32.mrb[0].mxu0
      %v815 = vadd.f32 %v698, %v814
      %v816 = vpop.f32.mrb[0].mxu0
      %817 = vmatprep.mubr.f32.mxu0 0.0
      %818 = vmatmul.mubr.f32.gmra.mrb[0].mxu0 %v509
      %v819 = vpop.f32.mrb[0].mxu0
      %v820 = vadd.f32 %v698, %v819
      %v821 = vpop.f32.mrb[0].mxu0
      %822 = vmatprep.mubr.f32.mxu0 0.0
      %823 = vmatmul.mubr.f32.gmra.mrb[0].mxu0 %v512
      %v824 = vpop.f32.mrb[0].mxu0
      %v825 = vadd.f32 %v698, %v824
      %v826 = vpop.f32.mrb[0].mxu0
      %827 = vmatprep.mubr.f32.mxu0 0.0
      %828 = vmatmul.mubr.f32.gmra.mrb[0].mxu0 %v515
      %v829 = vpop.f32.mrb[0].mxu0
      %v830 = vadd.f32 %v698, %v829
      %v831 = vpop.f32.mrb[0].mxu0
      %832 = vmatprep.mubr.f32.mxu0 0.0
      %833 = vmatmul.mubr.f32.gmra.mrb[0].mxu0 %v518
      %v834 = vpop.f32.mrb[0].mxu0
      %v835 = vadd.f32 %v698, %v834
      %v836 = vpop.f32.mrb[0].mxu0
      %837 = vmatprep.mubr.f32.mxu0 0.0
      %838 = vmatmul.mubr.f32.gmra.mrb[0].mxu0 %v521
      %v839 = vpop.f32.mrb[0].mxu0
      %v840 = vadd.f32 %v698, %v839
      %v841 = vpop.f32.mrb[0].mxu0
      %842 = vmatprep.mubr.f32.mxu0 0.0
      %843 = vmatmul.mubr.f32.gmra.mrb[0].mxu0 %v524
      %v844 = vpop.f32.mrb[0].mxu0
      %v845 = vadd.f32 %v698, %v844
      %v846 = vpop.f32.mrb[0].mxu0
      %847 = vmatprep.mubr.f32.mxu0 0.0
      %848 = vmatmul.mubr.f32.gmra.mrb[0].mxu0 %v527
      %v849 = vpop.f32.mrb[0].mxu0
      %v850 = vadd.f32 %v698, %v849
      %v851 = vpop.f32.mrb[0].mxu0
      %852 = vmatprep.mubr.f32.mxu0 0.0
      %853 = vmatmul.mubr.f32.gmra.mrb[0].mxu0 %v530
      %v854 = vpop.f32.mrb[0].mxu0
      %v855 = vadd.f32 %v698, %v854
      %v856 = vpop.f32.mrb[0].mxu0
      %857 = vdwg.mxu0
      %vm858 = vcmask 48128
      %v859 = vsel %vm858, %v770, -inf
      %860 = vmax.xlane.f32.xlu0 %v859
      %v861 = vpop.xlane.xlu0 %860
      %v862 = vsel %vm858, %v775, -inf
      %863 = vmax.xlane.f32.xlu0 %v862
      %v864 = vpop.xlane.xlu0 %863
      %v865 = vsel %vm858, %v780, -inf
      %866 = vmax.xlane.f32.xlu0 %v865
      %v867 = vpop.xlane.xlu0 %866
      %v868 = vsel %vm858, %v785, -inf
      %869 = vmax.xlane.f32.xlu0 %v868
      %v870 = vpop.xlane.xlu0 %869
      %v871 = vsel %vm858, %v790, -inf
      %872 = vmax.xlane.f32.xlu0 %v871
      %v873 = vpop.xlane.xlu0 %872
      %v874 = vsel %vm858, %v795, -inf
      %875 = vmax.xlane.f32.xlu0 %v874
      %v876 = vpop.xlane.xlu0 %875
      %v877 = vsel %vm858, %v800, -inf
      %878 = vmax.xlane.f32.xlu0 %v877
      %v879 = vpop.xlane.xlu0 %878
      %v880 = vsel %vm858, %v805, -inf
      %881 = vmax.xlane.f32.xlu0 %v880
      %v882 = vpop.xlane.xlu0 %881
      %v883 = vsel %vm858, %v810, -inf
      %884 = vmax.xlane.f32.xlu0 %v883
      %v885 = vpop.xlane.xlu0 %884
      %v886 = vsel %vm858, %v815, -inf
      %887 = vmax.xlane.f32.xlu0 %v886
      %v888 = vpop.xlane.xlu0 %887
      %v889 = vsel %vm858, %v820, -inf
      %890 = vmax.xlane.f32.xlu0 %v889
      %v891 = vpop.xlane.xlu0 %890
      %v892 = vsel %vm858, %v825, -inf
      %893 = vmax.xlane.f32.xlu0 %v892
      %v894 = vpop.xlane.xlu0 %893
      %v895 = vsel %vm858, %v830, -inf
      %896 = vmax.xlane.f32.xlu0 %v895
      %v897 = vpop.xlane.xlu0 %896
      %v898 = vsel %vm858, %v835, -inf
      %899 = vmax.xlane.f32.xlu0 %v898
      %v900 = vpop.xlane.xlu0 %899
      %v901 = vsel %vm858, %v840, -inf
      %902 = vmax.xlane.f32.xlu0 %v901
      %v903 = vpop.xlane.xlu0 %902
      %v904 = vsel %vm858, %v845, -inf
      %905 = vmax.xlane.f32.xlu0 %v904
      %v906 = vpop.xlane.xlu0 %905
      %v907 = vsel %vm858, %v850, -inf
      %908 = vmax.xlane.f32.xlu0 %v907
      %v909 = vpop.xlane.xlu0 %908
      %v910 = vsel %vm858, %v855, -inf
      %911 = vmax.xlane.f32.xlu0 %v910
      %v912 = vpop.xlane.xlu0 %911
      %v913 = vsub.f32 %v770, %v861
      %v914 = vsub.f32 %v775, %v864
      %v915 = vsub.f32 %v780, %v867
      %v916 = vsub.f32 %v785, %v870
      %v917 = vsub.f32 %v790, %v873
      %v918 = vsub.f32 %v795, %v876
      %v919 = vsub.f32 %v800, %v879
      %v920 = vsub.f32 %v805, %v882
      %v921 = vsub.f32 %v810, %v885
      %v922 = vsub.f32 %v815, %v888
      %v923 = vsub.f32 %v820, %v891
      %v924 = vsub.f32 %v825, %v894
      %v925 = vsub.f32 %v830, %v897
      %v926 = vsub.f32 %v835, %v900
      %v927 = vsub.f32 %v840, %v903
      %v928 = vsub.f32 %v845, %v906
      %v929 = vsub.f32 %v850, %v909
      %v930 = vsub.f32 %v855, %v912
      %v931 = vmul.f32 %v913, 1.442695
      %v932 = vpow.pop %v931
      %v933 = vmul.f32 %v914, 1.442695
      %v934 = vpow.pop %v933
      %v935 = vmul.f32 %v915, 1.442695
      %v936 = vpow.pop %v935
      %v937 = vmul.f32 %v916, 1.442695
      %v938 = vpow.pop %v937
      %v939 = vmul.f32 %v917, 1.442695
      %v940 = vpow.pop %v939
      %v941 = vmul.f32 %v918, 1.442695
      %v942 = vpow.pop %v941
      %v943 = vmul.f32 %v919, 1.442695
      %v944 = vpow.pop %v943
      %v945 = vmul.f32 %v920, 1.442695
      %v946 = vpow.pop %v945
      %v947 = vmul.f32 %v921, 1.442695
      %v948 = vpow.pop %v947
      %v949 = vmul.f32 %v922, 1.442695
      %v950 = vpow.pop %v949
      %v951 = vmul.f32 %v923, 1.442695
      %v952 = vpow.pop %v951
      %v953 = vmul.f32 %v924, 1.442695
      %v954 = vpow.pop %v953
      %v955 = vmul.f32 %v925, 1.442695
      %v956 = vpow.pop %v955
      %v957 = vmul.f32 %v926, 1.442695
      %v958 = vpow.pop %v957
      %v959 = vmul.f32 %v927, 1.442695
      %v960 = vpow.pop %v959
      %v961 = vmul.f32 %v928, 1.442695
      %v962 = vpow.pop %v961
      %v963 = vmul.f32 %v929, 1.442695
      %v964 = vpow.pop %v963
      %v965 = vmul.f32 %v930, 1.442695
      %v966 = vpow.pop %v965
      %v967 = vsel %vm858, %v932, 0.0
      %968 = vadd.xlane.f32.xlu0 %v967
      %v969 = vpop.xlane.xlu0 %968
      %v970 = vsel %vm858, %v934, 0.0
      %971 = vadd.xlane.f32.xlu0 %v970
      %v972 = vpop.xlane.xlu0 %971
      %v973 = vsel %vm858, %v936, 0.0
      %974 = vadd.xlane.f32.xlu0 %v973
      %v975 = vpop.xlane.xlu0 %974
      %v976 = vsel %vm858, %v938, 0.0
      %977 = vadd.xlane.f32.xlu0 %v976
      %v978 = vpop.xlane.xlu0 %977
      %v979 = vsel %vm858, %v940, 0.0
      %980 = vadd.xlane.f32.xlu0 %v979
      %v981 = vpop.xlane.xlu0 %980
      %v982 = vsel %vm858, %v942, 0.0
      %983 = vadd.xlane.f32.xlu0 %v982
      %v984 = vpop.xlane.xlu0 %983
      %v985 = vsel %vm858, %v944, 0.0
      %986 = vadd.xlane.f32.xlu0 %v985
      %v987 = vpop.xlane.xlu0 %986
      %v988 = vsel %vm858, %v946, 0.0
      %989 = vadd.xlane.f32.xlu0 %v988
      %v990 = vpop.xlane.xlu0 %989
      %v991 = vsel %vm858, %v948, 0.0
      %992 = vadd.xlane.f32.xlu0 %v991
      %v993 = vpop.xlane.xlu0 %992
      %v994 = vsel %vm858, %v950, 0.0
      %995 = vadd.xlane.f32.xlu0 %v994
      %v996 = vpop.xlane.xlu0 %995
      %v997 = vsel %vm858, %v952, 0.0
      %998 = vadd.xlane.f32.xlu0 %v997
      %v999 = vpop.xlane.xlu0 %998
      %v1000 = vsel %vm858, %v954, 0.0
      %1001 = vadd.xlane.f32.xlu0 %v1000
      %v1002 = vpop.xlane.xlu0 %1001
      %v1003 = vsel %vm858, %v956, 0.0
      %1004 = vadd.xlane.f32.xlu0 %v1003
      %v1005 = vpop.xlane.xlu0 %1004
      %v1006 = vsel %vm858, %v958, 0.0
      %1007 = vadd.xlane.f32.xlu0 %v1006
      %v1008 = vpop.xlane.xlu0 %1007
      %v1009 = vsel %vm858, %v960, 0.0
      %1010 = vadd.xlane.f32.xlu0 %v1009
      %v1011 = vpop.xlane.xlu0 %1010
      %v1012 = vsel %vm858, %v962, 0.0
      %1013 = vadd.xlane.f32.xlu0 %v1012
      %v1014 = vpop.xlane.xlu0 %1013
      %v1015 = vsel %vm858, %v964, 0.0
      %1016 = vadd.xlane.f32.xlu0 %v1015
      %v1017 = vpop.xlane.xlu0 %1016
      %v1018 = vsel %vm858, %v966, 0.0
      %1019 = vadd.xlane.f32.xlu0 %v1018
      %v1020 = vpop.xlane.xlu0 %1019
      %v1021 = vrcp.pop %v969
      %v1022 = vrcp.pop %v972
      %v1023 = vrcp.pop %v975
      %v1024 = vrcp.pop %v978
      %v1025 = vrcp.pop %v981
      %v1026 = vrcp.pop %v984
      %v1027 = vrcp.pop %v987
      %v1028 = vrcp.pop %v990
      %v1029 = vrcp.pop %v993
      %v1030 = vrcp.pop %v996
      %v1031 = vrcp.pop %v999
      %v1032 = vrcp.pop %v1002
      %v1033 = vrcp.pop %v1005
      %v1034 = vrcp.pop %v1008
      %v1035 = vrcp.pop %v1011
      %v1036 = vrcp.pop %v1014
      %v1037 = vrcp.pop %v1017
      %v1038 = vrcp.pop %v1020
      %v1039 = vmul.f32 %v932, %v1021
      %v1040 = vmul.f32 %v934, %v1022
      %v1041 = vmul.f32 %v936, %v1023
      %v1042 = vmul.f32 %v938, %v1024
      %v1043 = vmul.f32 %v940, %v1025
      %v1044 = vmul.f32 %v942, %v1026
      %v1045 = vmul.f32 %v944, %v1027
      %v1046 = vmul.f32 %v946, %v1028
      %v1047 = vmul.f32 %v948, %v1029
      %v1048 = vmul.f32 %v950, %v1030
      %v1049 = vmul.f32 %v952, %v1031
      %v1050 = vmul.f32 %v954, %v1032
      %v1051 = vmul.f32 %v956, %v1033
      %v1052 = vmul.f32 %v958, %v1034
      %v1053 = vmul.f32 %v960, %v1035
      %v1054 = vmul.f32 %v962, %v1036
      %v1055 = vmul.f32 %v964, %v1037
      %v1056 = vmul.f32 %v966, %v1038
      %v1057 = vsub.f32 1.0, %v1039
      %v1058 = vsub.f32 1.0, %v1040
      %v1059 = vsub.f32 1.0, %v1041
      %v1060 = vsub.f32 1.0, %v1042
      %v1061 = vsub.f32 1.0, %v1043
      %v1062 = vsub.f32 1.0, %v1044
      %v1063 = vsub.f32 1.0, %v1045
      %v1064 = vsub.f32 1.0, %v1046
      %v1065 = vsub.f32 1.0, %v1047
      %v1066 = vsub.f32 1.0, %v1048
      %v1067 = vsub.f32 1.0, %v1049
      %v1068 = vsub.f32 1.0, %v1050
      %v1069 = vsub.f32 1.0, %v1051
      %v1070 = vsub.f32 1.0, %v1052
      %v1071 = vsub.f32 1.0, %v1053
      %v1072 = vsub.f32 1.0, %v1054
      %v1073 = vsub.f32 1.0, %v1055
      %v1074 = vsub.f32 1.0, %v1056
      %v1075 = vsel %vm858, %v1039, 0.0
      %1076 = vadd.xlane.f32.xlu0 %v1075
      %v1077 = vpop.xlane.xlu0 %1076
      %v1078 = vsel %vm858, %v1040, 0.0
      %1079 = vadd.xlane.f32.xlu0 %v1078
      %v1080 = vpop.xlane.xlu0 %1079
      %v1081 = vsel %vm858, %v1041, 0.0
      %1082 = vadd.xlane.f32.xlu0 %v1081
      %v1083 = vpop.xlane.xlu0 %1082
      %v1084 = vsel %vm858, %v1042, 0.0
      %1085 = vadd.xlane.f32.xlu0 %v1084
      %v1086 = vpop.xlane.xlu0 %1085
      %v1087 = vsel %vm858, %v1043, 0.0
      %1088 = vadd.xlane.f32.xlu0 %v1087
      %v1089 = vpop.xlane.xlu0 %1088
      %v1090 = vsel %vm858, %v1044, 0.0
      %1091 = vadd.xlane.f32.xlu0 %v1090
      %v1092 = vpop.xlane.xlu0 %1091
      %v1093 = vsel %vm858, %v1045, 0.0
      %1094 = vadd.xlane.f32.xlu0 %v1093
      %v1095 = vpop.xlane.xlu0 %1094
      %v1096 = vsel %vm858, %v1046, 0.0
      %1097 = vadd.xlane.f32.xlu0 %v1096
      %v1098 = vpop.xlane.xlu0 %1097
      %v1099 = vsel %vm858, %v1047, 0.0
      %1100 = vadd.xlane.f32.xlu0 %v1099
      %v1101 = vpop.xlane.xlu0 %1100
      %v1102 = vsel %vm858, %v1048, 0.0
      %1103 = vadd.xlane.f32.xlu0 %v1102
      %v1104 = vpop.xlane.xlu0 %1103
      %v1105 = vsel %vm858, %v1049, 0.0
      %1106 = vadd.xlane.f32.xlu0 %v1105
      %v1107 = vpop.xlane.xlu0 %1106
      %v1108 = vsel %vm858, %v1050, 0.0
      %1109 = vadd.xlane.f32.xlu0 %v1108
      %v1110 = vpop.xlane.xlu0 %1109
      %v1111 = vsel %vm858, %v1051, 0.0
      %1112 = vadd.xlane.f32.xlu0 %v1111
      %v1113 = vpop.xlane.xlu0 %1112
      %v1114 = vsel %vm858, %v1052, 0.0
      %1115 = vadd.xlane.f32.xlu0 %v1114
      %v1116 = vpop.xlane.xlu0 %1115
      %v1117 = vsel %vm858, %v1053, 0.0
      %1118 = vadd.xlane.f32.xlu0 %v1117
      %v1119 = vpop.xlane.xlu0 %1118
      %v1120 = vsel %vm858, %v1054, 0.0
      %1121 = vadd.xlane.f32.xlu0 %v1120
      %v1122 = vpop.xlane.xlu0 %1121
      %v1123 = vsel %vm858, %v1055, 0.0
      %1124 = vadd.xlane.f32.xlu0 %v1123
      %v1125 = vpop.xlane.xlu0 %1124
      %v1126 = vsel %vm858, %v1056, 0.0
      %1127 = vadd.xlane.f32.xlu0 %v1126
      %v1128 = vpop.xlane.xlu0 %1127
      %v1129 = vsub.f32 %v1077, %v1039
      %v1130 = vsub.f32 %v1080, %v1040
      %v1131 = vsub.f32 %v1083, %v1041
      %v1132 = vsub.f32 %v1086, %v1042
      %v1133 = vsub.f32 %v1089, %v1043
      %v1134 = vsub.f32 %v1092, %v1044
      %v1135 = vsub.f32 %v1095, %v1045
      %v1136 = vsub.f32 %v1098, %v1046
      %v1137 = vsub.f32 %v1101, %v1047
      %v1138 = vsub.f32 %v1104, %v1048
      %v1139 = vsub.f32 %v1107, %v1049
      %v1140 = vsub.f32 %v1110, %v1050
      %v1141 = vsub.f32 %v1113, %v1051
      %v1142 = vsub.f32 %v1116, %v1052
      %v1143 = vsub.f32 %v1119, %v1053
      %v1144 = vsub.f32 %v1122, %v1054
      %v1145 = vsub.f32 %v1125, %v1055
      %v1146 = vsub.f32 %v1128, %v1056
      %v1147 = vadd.f32 %v1057, %v1129
      %v1148 = vadd.f32 %v1058, %v1130
      %v1149 = vadd.f32 %v1059, %v1131
      %v1150 = vadd.f32 %v1060, %v1132
      %v1151 = vadd.f32 %v1061, %v1133
      %v1152 = vadd.f32 %v1062, %v1134
      %v1153 = vadd.f32 %v1063, %v1135
      %v1154 = vadd.f32 %v1064, %v1136
      %v1155 = vadd.f32 %v1065, %v1137
      %v1156 = vadd.f32 %v1066, %v1138
      %v1157 = vadd.f32 %v1067, %v1139
      %v1158 = vadd.f32 %v1068, %v1140
      %v1159 = vadd.f32 %v1069, %v1141
      %v1160 = vadd.f32 %v1070, %v1142
      %v1161 = vadd.f32 %v1071, %v1143
      %v1162 = vadd.f32 %v1072, %v1144
      %v1163 = vadd.f32 %v1073, %v1145
      %v1164 = vadd.f32 %v1074, %v1146
      %v1165 = vmax.f32 %v1147, 1e-12
      %v1166 = vmax.f32 %v1148, 1e-12
      %v1167 = vmax.f32 %v1149, 1e-12
      %v1168 = vmax.f32 %v1150, 1e-12
      %v1169 = vmax.f32 %v1151, 1e-12
      %v1170 = vmax.f32 %v1152, 1e-12
      %v1171 = vmax.f32 %v1153, 1e-12
      %v1172 = vmax.f32 %v1154, 1e-12
      %v1173 = vmax.f32 %v1155, 1e-12
      %v1174 = vmax.f32 %v1156, 1e-12
      %v1175 = vmax.f32 %v1157, 1e-12
      %v1176 = vmax.f32 %v1158, 1e-12
      %v1177 = vmax.f32 %v1159, 1e-12
      %v1178 = vmax.f32 %v1160, 1e-12
      %v1179 = vmax.f32 %v1161, 1e-12
      %v1180 = vmax.f32 %v1162, 1e-12
      %v1181 = vmax.f32 %v1163, 1e-12
      %v1182 = vmax.f32 %v1164, 1e-12
      %v1183 = vrcp.pop %v1165
      %v1184 = vrcp.pop %v1166
      %v1185 = vrcp.pop %v1167
      %v1186 = vrcp.pop %v1168
      %v1187 = vrcp.pop %v1169
      %v1188 = vrcp.pop %v1170
      %v1189 = vrcp.pop %v1171
      %v1190 = vrcp.pop %v1172
      %v1191 = vrcp.pop %v1173
      %v1192 = vrcp.pop %v1174
      %v1193 = vrcp.pop %v1175
      %v1194 = vrcp.pop %v1176
      %v1195 = vrcp.pop %v1177
      %v1196 = vrcp.pop %v1178
      %v1197 = vrcp.pop %v1179
      %v1198 = vrcp.pop %v1180
      %v1199 = vrcp.pop %v1181
      %v1200 = vrcp.pop %v1182
      %v1201 = vmul.f32 %v1057, %v1183
      %v1202 = vmul.f32 %v1058, %v1184
      %v1203 = vmul.f32 %v1059, %v1185
      %v1204 = vmul.f32 %v1060, %v1186
      %v1205 = vmul.f32 %v1061, %v1187
      %v1206 = vmul.f32 %v1062, %v1188
      %v1207 = vmul.f32 %v1063, %v1189
      %v1208 = vmul.f32 %v1064, %v1190
      %v1209 = vmul.f32 %v1065, %v1191
      %v1210 = vmul.f32 %v1066, %v1192
      %v1211 = vmul.f32 %v1067, %v1193
      %v1212 = vmul.f32 %v1068, %v1194
      %v1213 = vmul.f32 %v1069, %v1195
      %v1214 = vmul.f32 %v1070, %v1196
      %v1215 = vmul.f32 %v1071, %v1197
      %v1216 = vmul.f32 %v1072, %v1198
      %v1217 = vmul.f32 %v1073, %v1199
      %v1218 = vmul.f32 %v1074, %v1200
      %v1219 = vmul.f32 %v1129, %v1183
      %v1220 = vmul.f32 %v1130, %v1184
      %v1221 = vmul.f32 %v1131, %v1185
      %v1222 = vmul.f32 %v1132, %v1186
      %v1223 = vmul.f32 %v1133, %v1187
      %v1224 = vmul.f32 %v1134, %v1188
      %v1225 = vmul.f32 %v1135, %v1189
      %v1226 = vmul.f32 %v1136, %v1190
      %v1227 = vmul.f32 %v1137, %v1191
      %v1228 = vmul.f32 %v1138, %v1192
      %v1229 = vmul.f32 %v1139, %v1193
      %v1230 = vmul.f32 %v1140, %v1194
      %v1231 = vmul.f32 %v1141, %v1195
      %v1232 = vmul.f32 %v1142, %v1196
      %v1233 = vmul.f32 %v1143, %v1197
      %v1234 = vmul.f32 %v1144, %v1198
      %v1235 = vmul.f32 %v1145, %v1199
      %v1236 = vmul.f32 %v1146, %v1200
      %v1237 = vadd.f32 %v603, %v608
      %v1238 = vadd.f32 %v1237, %v613
      %v1239 = vadd.f32 %v1238, %v618
      %v1240 = vadd.f32 %v1239, %v623
      %v1241 = vadd.f32 %v1240, %v628
      %v1242 = vadd.f32 %v1241, %v633
      %v1243 = vadd.f32 %v1242, %v638
      %v1244 = vadd.f32 %v1243, %v643
      %v1245 = vadd.f32 %v1244, %v648
      %v1246 = vadd.f32 %v1245, %v653
      %v1247 = vadd.f32 %v1246, %v658
      %v1248 = vadd.f32 %v1247, %v663
      %v1249 = vadd.f32 %v1248, %v668
      %v1250 = vadd.f32 %v1249, %v673
      %v1251 = vadd.f32 %v1250, %v678
      %v1252 = vadd.f32 %v1251, %v683
      %v1253 = vadd.f32 %v1252, %v688
      %v1254 = vrot.slane %v1253, 4
      %v1255 = vadd.f32 %v1253, %v1254
      %v1256 = vrot.slane %v1255, 2
      %v1257 = vadd.f32 %v1255, %v1256
      %v1258 = vrot.slane %v1257, 1
      %v1259 = vadd.f32 %v1257, %v1258
      %1261 = vset.pattern.permute.xlu0 0
      %1262 = vperm.xlu0 %1261, %v1201
      %v1263 = vpop.permute.xlu0 %1262
      %1266 = vset.pattern.permute.xlu0 0
      %1267 = vperm.xlu0 %1266, %v1202
      %v1268 = vpop.permute.xlu0 %1267
      %1271 = vset.pattern.permute.xlu0 0
      %1272 = vperm.xlu0 %1271, %v1203
      %v1273 = vpop.permute.xlu0 %1272
      %1276 = vset.pattern.permute.xlu0 0
      %1277 = vperm.xlu0 %1276, %v1204
      %v1278 = vpop.permute.xlu0 %1277
      %1281 = vset.pattern.permute.xlu0 0
      %1282 = vperm.xlu0 %1281, %v1205
      %v1283 = vpop.permute.xlu0 %1282
      %1286 = vset.pattern.permute.xlu0 0
      %1287 = vperm.xlu0 %1286, %v1206
      %v1288 = vpop.permute.xlu0 %1287
      %1291 = vset.pattern.permute.xlu0 0
      %1292 = vperm.xlu0 %1291, %v1207
      %v1293 = vpop.permute.xlu0 %1292
      %1296 = vset.pattern.permute.xlu0 0
      %1297 = vperm.xlu0 %1296, %v1208
      %v1298 = vpop.permute.xlu0 %1297
      %1301 = vset.pattern.permute.xlu0 0
      %1302 = vperm.xlu0 %1301, %v1209
      %v1303 = vpop.permute.xlu0 %1302
      %1306 = vset.pattern.permute.xlu0 0
      %1307 = vperm.xlu0 %1306, %v1210
      %v1308 = vpop.permute.xlu0 %1307
      %1311 = vset.pattern.permute.xlu0 0
      %1312 = vperm.xlu0 %1311, %v1211
      %v1313 = vpop.permute.xlu0 %1312
      %1316 = vset.pattern.permute.xlu0 0
      %1317 = vperm.xlu0 %1316, %v1212
      %v1318 = vpop.permute.xlu0 %1317
      %1321 = vset.pattern.permute.xlu0 0
      %1322 = vperm.xlu0 %1321, %v1213
      %v1323 = vpop.permute.xlu0 %1322
      %1326 = vset.pattern.permute.xlu0 0
      %1327 = vperm.xlu0 %1326, %v1214
      %v1328 = vpop.permute.xlu0 %1327
      %1331 = vset.pattern.permute.xlu0 0
      %1332 = vperm.xlu0 %1331, %v1215
      %v1333 = vpop.permute.xlu0 %1332
      %1336 = vset.pattern.permute.xlu0 0
      %1337 = vperm.xlu0 %1336, %v1216
      %v1338 = vpop.permute.xlu0 %1337
      %1341 = vset.pattern.permute.xlu0 0
      %1342 = vperm.xlu0 %1341, %v1217
      %v1343 = vpop.permute.xlu0 %1342
      %1346 = vset.pattern.permute.xlu0 0
      %1347 = vperm.xlu0 %1346, %v1218
      %v1348 = vpop.permute.xlu0 %1347
      %v1350 = vmul.f32 %v603, %v1263
      %v1351 = vmul.f32 %v608, %v1268
      %v1352 = vmul.f32 %v613, %v1273
      %v1353 = vmul.f32 %v618, %v1278
      %v1354 = vmul.f32 %v623, %v1283
      %v1355 = vmul.f32 %v628, %v1288
      %v1356 = vmul.f32 %v633, %v1293
      %v1357 = vmul.f32 %v638, %v1298
      %v1358 = vmul.f32 %v643, %v1303
      %v1359 = vmul.f32 %v648, %v1308
      %v1360 = vmul.f32 %v653, %v1313
      %v1361 = vmul.f32 %v658, %v1318
      %v1362 = vmul.f32 %v663, %v1323
      %v1363 = vmul.f32 %v668, %v1328
      %v1364 = vmul.f32 %v673, %v1333
      %v1365 = vmul.f32 %v678, %v1338
      %v1366 = vmul.f32 %v683, %v1343
      %v1367 = vmul.f32 %v688, %v1348
      %v1368 = vadd.f32 %v1350, %v1351
      %v1369 = vadd.f32 %v1368, %v1352
      %v1370 = vadd.f32 %v1369, %v1353
      %v1371 = vadd.f32 %v1370, %v1354
      %v1372 = vadd.f32 %v1371, %v1355
      %v1373 = vadd.f32 %v1372, %v1356
      %v1374 = vadd.f32 %v1373, %v1357
      %v1375 = vadd.f32 %v1374, %v1358
      %v1376 = vadd.f32 %v1375, %v1359
      %v1377 = vadd.f32 %v1376, %v1360
      %v1378 = vadd.f32 %v1377, %v1361
      %v1379 = vadd.f32 %v1378, %v1362
      %v1380 = vadd.f32 %v1379, %v1363
      %v1381 = vadd.f32 %v1380, %v1364
      %v1382 = vadd.f32 %v1381, %v1365
      %v1383 = vadd.f32 %v1382, %v1366
      %v1384 = vadd.f32 %v1383, %v1367
      %v1385 = vrot.slane %v1384, 4
      %v1386 = vadd.f32 %v1384, %v1385
      %v1387 = vrot.slane %v1386, 2
      %v1388 = vadd.f32 %v1386, %v1387
      %v1389 = vrot.slane %v1388, 1
      %v1390 = vadd.f32 %v1388, %v1389
      %1392 = vset.pattern.permute.xlu0 0
      %1393 = vperm.xlu0 %1392, %v1219
      %v1394 = vpop.permute.xlu0 %1393
      %1397 = vset.pattern.permute.xlu0 0
      %1398 = vperm.xlu0 %1397, %v1220
      %v1399 = vpop.permute.xlu0 %1398
      %1402 = vset.pattern.permute.xlu0 0
      %1403 = vperm.xlu0 %1402, %v1221
      %v1404 = vpop.permute.xlu0 %1403
      %1407 = vset.pattern.permute.xlu0 0
      %1408 = vperm.xlu0 %1407, %v1222
      %v1409 = vpop.permute.xlu0 %1408
      %1412 = vset.pattern.permute.xlu0 0
      %1413 = vperm.xlu0 %1412, %v1223
      %v1414 = vpop.permute.xlu0 %1413
      %1417 = vset.pattern.permute.xlu0 0
      %1418 = vperm.xlu0 %1417, %v1224
      %v1419 = vpop.permute.xlu0 %1418
      %1422 = vset.pattern.permute.xlu0 0
      %1423 = vperm.xlu0 %1422, %v1225
      %v1424 = vpop.permute.xlu0 %1423
      %1427 = vset.pattern.permute.xlu0 0
      %1428 = vperm.xlu0 %1427, %v1226
      %v1429 = vpop.permute.xlu0 %1428
      %1432 = vset.pattern.permute.xlu0 0
      %1433 = vperm.xlu0 %1432, %v1227
      %v1434 = vpop.permute.xlu0 %1433
      %1437 = vset.pattern.permute.xlu0 0
      %1438 = vperm.xlu0 %1437, %v1228
      %v1439 = vpop.permute.xlu0 %1438
      %1442 = vset.pattern.permute.xlu0 0
      %1443 = vperm.xlu0 %1442, %v1229
      %v1444 = vpop.permute.xlu0 %1443
      %1447 = vset.pattern.permute.xlu0 0
      %1448 = vperm.xlu0 %1447, %v1230
      %v1449 = vpop.permute.xlu0 %1448
      %1452 = vset.pattern.permute.xlu0 0
      %1453 = vperm.xlu0 %1452, %v1231
      %v1454 = vpop.permute.xlu0 %1453
      %1457 = vset.pattern.permute.xlu0 0
      %1458 = vperm.xlu0 %1457, %v1232
      %v1459 = vpop.permute.xlu0 %1458
      %1462 = vset.pattern.permute.xlu0 0
      %1463 = vperm.xlu0 %1462, %v1233
      %v1464 = vpop.permute.xlu0 %1463
      %1467 = vset.pattern.permute.xlu0 0
      %1468 = vperm.xlu0 %1467, %v1234
      %v1469 = vpop.permute.xlu0 %1468
      %1472 = vset.pattern.permute.xlu0 0
      %1473 = vperm.xlu0 %1472, %v1235
      %v1474 = vpop.permute.xlu0 %1473
      %1477 = vset.pattern.permute.xlu0 0
      %1478 = vperm.xlu0 %1477, %v1236
      %v1479 = vpop.permute.xlu0 %1478
      %v1481 = vmul.f32 %v603, %v1394
      %v1482 = vmul.f32 %v608, %v1399
      %v1483 = vmul.f32 %v613, %v1404
      %v1484 = vmul.f32 %v618, %v1409
      %v1485 = vmul.f32 %v623, %v1414
      %v1486 = vmul.f32 %v628, %v1419
      %v1487 = vmul.f32 %v633, %v1424
      %v1488 = vmul.f32 %v638, %v1429
      %v1489 = vmul.f32 %v643, %v1434
      %v1490 = vmul.f32 %v648, %v1439
      %v1491 = vmul.f32 %v653, %v1444
      %v1492 = vmul.f32 %v658, %v1449
      %v1493 = vmul.f32 %v663, %v1454
      %v1494 = vmul.f32 %v668, %v1459
      %v1495 = vmul.f32 %v673, %v1464
      %v1496 = vmul.f32 %v678, %v1469
      %v1497 = vmul.f32 %v683, %v1474
      %v1498 = vmul.f32 %v688, %v1479
      %v1499 = vadd.f32 %v1481, %v1482
      %v1500 = vadd.f32 %v1499, %v1483
      %v1501 = vadd.f32 %v1500, %v1484
      %v1502 = vadd.f32 %v1501, %v1485
      %v1503 = vadd.f32 %v1502, %v1486
      %v1504 = vadd.f32 %v1503, %v1487
      %v1505 = vadd.f32 %v1504, %v1488
      %v1506 = vadd.f32 %v1505, %v1489
      %v1507 = vadd.f32 %v1506, %v1490
      %v1508 = vadd.f32 %v1507, %v1491
      %v1509 = vadd.f32 %v1508, %v1492
      %v1510 = vadd.f32 %v1509, %v1493
      %v1511 = vadd.f32 %v1510, %v1494
      %v1512 = vadd.f32 %v1511, %v1495
      %v1513 = vadd.f32 %v1512, %v1496
      %v1514 = vadd.f32 %v1513, %v1497
      %v1515 = vadd.f32 %v1514, %v1498
      %v1516 = vrot.slane %v1515, 4
      %v1517 = vadd.f32 %v1515, %v1516
      %v1518 = vrot.slane %v1517, 2
      %v1519 = vadd.f32 %v1517, %v1518
      %v1520 = vrot.slane %v1519, 1
      %v1521 = vadd.f32 %v1519, %v1520
      %vm1522 = vcmask 1040384
      %v1523 = vsel %vm1522, %v1259, %v1390
      %vm1524 = vcmask 1041408
      %v1525 = vsel %vm1524, %v1523, %v1521
      %v1526 = vmul.f32 %v1525, 0.0069444445
      %v1527 = vlaneseq
      %v1528 = vshrl.u32 %v1527, 7
      %vm1529 = vcmp.eq.s32.totalorder %v1528, 0
      %v1530 = vld [vmem:[%s5] sm:$0xff]
      %v1531 = vld [vmem:[%s5 + $0x8] sm:$0xff]
      %v1532 = vld [vmem:[%s5 + $0x10] sm:$0xff]
      %v1533 = vld [vmem:[%s5 + $0x18] sm:$0xff]
      %v1534 = vld [vmem:[%s5 + $0x20] sm:$0xff]
      %v1535 = vld [vmem:[%s5 + $0x28] sm:$0xff]
      %v1536 = vld [vmem:[%s5 + $0x30] sm:$0xff]
      %v1537 = vld [vmem:[%s5 + $0x38] sm:$0xff]
      %v1538 = vld [vmem:[%s5 + $0x40] sm:$0xff]
      %v1539 = vld [vmem:[%s5 + $0x48] sm:$0xff]
      %v1540 = vld [vmem:[%s5 + $0x50] sm:$0xff]
      %v1541 = vld [vmem:[%s5 + $0x58] sm:$0xff]
      %v1542 = vld [vmem:[%s5 + $0x60] sm:$0xff]
      %v1543 = vld [vmem:[%s5 + $0x68] sm:$0xff]
      %v1544 = vld [vmem:[%s5 + $0x70] sm:$0xff]
      %v1545 = vld [vmem:[%s5 + $0x78] sm:$0xff]
      %1546 = vmatprep.subr.mxu0 0.0
      %1547 = vmatpush1.msra.mxu0 %v1530
      %1548 = vmatprep.subr.mxu0 0.0
      %1549 = vmatpush1.msra.mxu0 %v1531
      %1550 = vmatprep.subr.mxu0 0.0
      %1551 = vmatpush1.msra.mxu0 %v1532
      %1552 = vmatprep.subr.mxu0 0.0
      %1553 = vmatpush1.msra.mxu0 %v1533
      %1554 = vmatprep.subr.mxu0 0.0
      %1555 = vmatpush1.msra.mxu0 %v1534
      %1556 = vmatprep.subr.mxu0 0.0
      %1557 = vmatpush1.msra.mxu0 %v1535
      %1558 = vmatprep.subr.mxu0 0.0
      %1559 = vmatpush1.msra.mxu0 %v1536
      %1560 = vmatprep.subr.mxu0 0.0
      %1561 = vmatpush1.msra.mxu0 %v1537
      %1562 = vmatprep.subr.mxu0 0.0
      %1563 = vmatpush1.msra.mxu0 %v1538
      %1564 = vmatprep.subr.mxu0 0.0
      %1565 = vmatpush1.msra.mxu0 %v1539
      %1566 = vmatprep.subr.mxu0 0.0
      %1567 = vmatpush1.msra.mxu0 %v1540
      %1568 = vmatprep.subr.mxu0 0.0
      %1569 = vmatpush1.msra.mxu0 %v1541
      %1570 = vmatprep.subr.mxu0 0.0
      %1571 = vmatpush1.msra.mxu0 %v1542
      %1572 = vmatprep.subr.mxu0 0.0
      %1573 = vmatpush1.msra.mxu0 %v1543
      %1574 = vmatprep.subr.mxu0 0.0
      %1575 = vmatpush1.msra.mxu0 %v1544
      %1576 = vmatprep.subr.mxu0 0.0
      %1577 = vmatpush1.msra.mxu0 %v1545
      %1578 = vmatprep.subr.mxu0 0.0
      %1579 = vmatpush1.msra.mxu0 0.0
      %1580 = vmatprep.subr.mxu0 0.0
      %1581 = vmatpush1.msra.mxu0 0.0
      %1582 = vmatprep.subr.mxu0 0.0
      %1583 = vmatpush1.msra.mxu0 0.0
      %1584 = vmatprep.subr.mxu0 0.0
      %1585 = vmatpush1.msra.mxu0 0.0
      %1586 = vmatprep.subr.mxu0 0.0
      %1587 = vmatpush1.msra.mxu0 0.0
      %1588 = vmatprep.subr.mxu0 0.0
      %1589 = vmatpush1.msra.mxu0 0.0
      %1590 = vmatprep.subr.mxu0 0.0
      %1591 = vmatpush1.msra.mxu0 0.0
      %1592 = vmatprep.subr.mxu0 0.0
      %1593 = vmatpush1.msra.mxu0 0.0
      %1594 = vmatprep.subr.mxu0 0.0
      %1595 = vmatpush1.msra.mxu0 0.0
      %1596 = vmatprep.subr.mxu0 0.0
      %1597 = vmatpush1.msra.mxu0 0.0
      %1598 = vmatprep.subr.mxu0 0.0
      %1599 = vmatpush1.msra.mxu0 0.0
      %1600 = vmatprep.subr.mxu0 0.0
      %1601 = vmatpush1.msra.mxu0 0.0
      %1602 = vmatprep.subr.mxu0 0.0
      %1603 = vmatpush1.msra.mxu0 0.0
      %1604 = vmatprep.subr.mxu0 0.0
      %1605 = vmatpush1.msra.mxu0 0.0
      %1606 = vmatprep.subr.mxu0 0.0
      %1607 = vmatpush1.msra.mxu0 0.0
      %1608 = vmatprep.subr.mxu0 0.0
      %1609 = vmatpush1.msra.mxu0 0.0
      %1610 = vmatprep.mubr.f32.mxu0 0.0
      %1611 = vmatmul.mubr.f32.gmra.mrb[0].mxu0 %v1526
      %v1612 = vpop.f32.mrb[0].mxu0
      %v1613 = vadd.f32 0.0, %v1612
      %v1614 = vpop.f32.mrb[0].mxu0
      %1615 = vdwg.mxu0
      %v1616 = vld [vmem:[%s6] sm:$0xff]
      %v1617 = vld [vmem:[%s6 + $0x8] sm:$0xff]
      %v1618 = vld [vmem:[%s6 + $0x10] sm:$0xff]
      %v1619 = vld [vmem:[%s6 + $0x18] sm:$0xff]
      %v1620 = vld [vmem:[%s6 + $0x20] sm:$0xff]
      %v1621 = vld [vmem:[%s6 + $0x28] sm:$0xff]
      %v1622 = vld [vmem:[%s6 + $0x30] sm:$0xff]
      %v1623 = vld [vmem:[%s6 + $0x38] sm:$0xff]
      %v1624 = vld [vmem:[%s6 + $0x40] sm:$0xff]
      %v1625 = vld [vmem:[%s6 + $0x48] sm:$0xff]
      %v1626 = vld [vmem:[%s6 + $0x50] sm:$0xff]
      %v1627 = vld [vmem:[%s6 + $0x58] sm:$0xff]
      %v1628 = vld [vmem:[%s6 + $0x60] sm:$0xff]
      %v1629 = vld [vmem:[%s6 + $0x68] sm:$0xff]
      %v1630 = vld [vmem:[%s6 + $0x70] sm:$0xff]
      %v1631 = vld [vmem:[%s6 + $0x78] sm:$0xff]
      %1632 = vmatprep.subr.mxu0 0.0
      %1633 = vmatpush1.msra.mxu0 %v1616
      %1634 = vmatprep.subr.mxu0 0.0
      %1635 = vmatpush1.msra.mxu0 %v1617
      %1636 = vmatprep.subr.mxu0 0.0
      %1637 = vmatpush1.msra.mxu0 %v1618
      %1638 = vmatprep.subr.mxu0 0.0
      %1639 = vmatpush1.msra.mxu0 %v1619
      %1640 = vmatprep.subr.mxu0 0.0
      %1641 = vmatpush1.msra.mxu0 %v1620
      %1642 = vmatprep.subr.mxu0 0.0
      %1643 = vmatpush1.msra.mxu0 %v1621
      %1644 = vmatprep.subr.mxu0 0.0
      %1645 = vmatpush1.msra.mxu0 %v1622
      %1646 = vmatprep.subr.mxu0 0.0
      %1647 = vmatpush1.msra.mxu0 %v1623
      %1648 = vmatprep.subr.mxu0 0.0
      %1649 = vmatpush1.msra.mxu0 %v1624
      %1650 = vmatprep.subr.mxu0 0.0
      %1651 = vmatpush1.msra.mxu0 %v1625
      %1652 = vmatprep.subr.mxu0 0.0
      %1653 = vmatpush1.msra.mxu0 %v1626
      %1654 = vmatprep.subr.mxu0 0.0
      %1655 = vmatpush1.msra.mxu0 %v1627
      %1656 = vmatprep.subr.mxu0 0.0
      %1657 = vmatpush1.msra.mxu0 %v1628
      %1658 = vmatprep.subr.mxu0 0.0
      %1659 = vmatpush1.msra.mxu0 %v1629
      %1660 = vmatprep.subr.mxu0 0.0
      %1661 = vmatpush1.msra.mxu0 %v1630
      %1662 = vmatprep.subr.mxu0 0.0
      %1663 = vmatpush1.msra.mxu0 %v1631
      %1664 = vmatprep.subr.mxu0 0.0
      %1665 = vmatpush1.msra.mxu0 0.0
      %1666 = vmatprep.subr.mxu0 0.0
      %1667 = vmatpush1.msra.mxu0 0.0
      %1668 = vmatprep.subr.mxu0 0.0
      %1669 = vmatpush1.msra.mxu0 0.0
      %1670 = vmatprep.subr.mxu0 0.0
      %1671 = vmatpush1.msra.mxu0 0.0
      %1672 = vmatprep.subr.mxu0 0.0
      %1673 = vmatpush1.msra.mxu0 0.0
      %1674 = vmatprep.subr.mxu0 0.0
      %1675 = vmatpush1.msra.mxu0 0.0
      %1676 = vmatprep.subr.mxu0 0.0
      %1677 = vmatpush1.msra.mxu0 0.0
      %1678 = vmatprep.subr.mxu0 0.0
      %1679 = vmatpush1.msra.mxu0 0.0
      %1680 = vmatprep.subr.mxu0 0.0
      %1681 = vmatpush1.msra.mxu0 0.0
      %1682 = vmatprep.subr.mxu0 0.0
      %1683 = vmatpush1.msra.mxu0 0.0
      %1684 = vmatprep.subr.mxu0 0.0
      %1685 = vmatpush1.msra.mxu0 0.0
      %1686 = vmatprep.subr.mxu0 0.0
      %1687 = vmatpush1.msra.mxu0 0.0
      %1688 = vmatprep.subr.mxu0 0.0
      %1689 = vmatpush1.msra.mxu0 0.0
      %1690 = vmatprep.subr.mxu0 0.0
      %1691 = vmatpush1.msra.mxu0 0.0
      %1692 = vmatprep.subr.mxu0 0.0
      %1693 = vmatpush1.msra.mxu0 0.0
      %1694 = vmatprep.subr.mxu0 0.0
      %1695 = vmatpush1.msra.mxu0 0.0
      %1696 = vmatprep.mubr.f32.mxu0 0.0
      %1697 = vmatmul.mubr.f32.gmra.mrb[0].mxu0 %v1526
      %v1698 = vpop.f32.mrb[0].mxu0
      %v1699 = vadd.f32 0.0, %v1698
      %v1700 = vpop.f32.mrb[0].mxu0
      %1701 = vdwg.mxu0
      %v1702 = vsel %vm1529, 1, 0
      %vm1703 = vcmp.eq.s32.totalorder %v1702, 1
      %v1704 = vsel %vm1703, %v1613, %v1699
      %v1705 = vld [vmem:[%s7] sm:$0x7]
      %v1706 = vmul.f32 %v1704, %v1705
      %v1707 = vld [vmem:[%s8] sm:$0x7]
      %v1708 = vadd.f32 %v1706, %v1707
      %1709 = vst [vmem:[%s449] sm:$0x7] %v1708
      %v1710 = vld [vmem:[%s9] sm:$0xff]
      %v1711 = vld [vmem:[%s9 + $0x8] sm:$0xff]
      %v1712 = vld [vmem:[%s9 + $0x10] sm:$0xff]
      %v1713 = vld [vmem:[%s9 + $0x18] sm:$0xff]
      %v1714 = vld [vmem:[%s9 + $0x20] sm:$0xff]
      %v1715 = vld [vmem:[%s9 + $0x28] sm:$0xff]
      %v1716 = vld [vmem:[%s9 + $0x30] sm:$0xff]
      %v1717 = vld [vmem:[%s9 + $0x38] sm:$0xff]
      %v1718 = vld [vmem:[%s9 + $0x40] sm:$0xff]
      %v1719 = vld [vmem:[%s9 + $0x48] sm:$0xff]
      %v1720 = vld [vmem:[%s9 + $0x50] sm:$0xff]
      %v1721 = vld [vmem:[%s9 + $0x58] sm:$0xff]
      %v1722 = vld [vmem:[%s9 + $0x60] sm:$0xff]
      %v1723 = vld [vmem:[%s9 + $0x68] sm:$0xff]
      %v1724 = vld [vmem:[%s9 + $0x70] sm:$0xff]
      %v1725 = vld [vmem:[%s9 + $0x78] sm:$0xff]
      %1726 = vmatprep.subr.mxu0 0.0
      %1727 = vmatpush1.msra.mxu0 %v1710
      %1728 = vmatprep.subr.mxu0 0.0
      %1729 = vmatpush1.msra.mxu0 %v1711
      %1730 = vmatprep.subr.mxu0 0.0
      %1731 = vmatpush1.msra.mxu0 %v1712
      %1732 = vmatprep.subr.mxu0 0.0
      %1733 = vmatpush1.msra.mxu0 %v1713
      %1734 = vmatprep.subr.mxu0 0.0
      %1735 = vmatpush1.msra.mxu0 %v1714
      %1736 = vmatprep.subr.mxu0 0.0
      %1737 = vmatpush1.msra.mxu0 %v1715
      %1738 = vmatprep.subr.mxu0 0.0
      %1739 = vmatpush1.msra.mxu0 %v1716
      %1740 = vmatprep.subr.mxu0 0.0
      %1741 = vmatpush1.msra.mxu0 %v1717
      %1742 = vmatprep.subr.mxu0 0.0
      %1743 = vmatpush1.msra.mxu0 %v1718
      %1744 = vmatprep.subr.mxu0 0.0
      %1745 = vmatpush1.msra.mxu0 %v1719
      %1746 = vmatprep.subr.mxu0 0.0
      %1747 = vmatpush1.msra.mxu0 %v1720
      %1748 = vmatprep.subr.mxu0 0.0
      %1749 = vmatpush1.msra.mxu0 %v1721
      %1750 = vmatprep.subr.mxu0 0.0
      %1751 = vmatpush1.msra.mxu0 %v1722
      %1752 = vmatprep.subr.mxu0 0.0
      %1753 = vmatpush1.msra.mxu0 %v1723
      %1754 = vmatprep.subr.mxu0 0.0
      %1755 = vmatpush1.msra.mxu0 %v1724
      %1756 = vmatprep.subr.mxu0 0.0
      %1757 = vmatpush1.msra.mxu0 %v1725
      %1758 = vmatprep.subr.mxu0 0.0
      %1759 = vmatpush1.msra.mxu0 0.0
      %1760 = vmatprep.subr.mxu0 0.0
      %1761 = vmatpush1.msra.mxu0 0.0
      %1762 = vmatprep.subr.mxu0 0.0
      %1763 = vmatpush1.msra.mxu0 0.0
      %1764 = vmatprep.subr.mxu0 0.0
      %1765 = vmatpush1.msra.mxu0 0.0
      %1766 = vmatprep.subr.mxu0 0.0
      %1767 = vmatpush1.msra.mxu0 0.0
      %1768 = vmatprep.subr.mxu0 0.0
      %1769 = vmatpush1.msra.mxu0 0.0
      %1770 = vmatprep.subr.mxu0 0.0
      %1771 = vmatpush1.msra.mxu0 0.0
      %1772 = vmatprep.subr.mxu0 0.0
      %1773 = vmatpush1.msra.mxu0 0.0
      %1774 = vmatprep.subr.mxu0 0.0
      %1775 = vmatpush1.msra.mxu0 0.0
      %1776 = vmatprep.subr.mxu0 0.0
      %1777 = vmatpush1.msra.mxu0 0.0
      %1778 = vmatprep.subr.mxu0 0.0
      %1779 = vmatpush1.msra.mxu0 0.0
      %1780 = vmatprep.subr.mxu0 0.0
      %1781 = vmatpush1.msra.mxu0 0.0
      %1782 = vmatprep.subr.mxu0 0.0
      %1783 = vmatpush1.msra.mxu0 0.0
      %1784 = vmatprep.subr.mxu0 0.0
      %1785 = vmatpush1.msra.mxu0 0.0
      %1786 = vmatprep.subr.mxu0 0.0
      %1787 = vmatpush1.msra.mxu0 0.0
      %1788 = vmatprep.subr.mxu0 0.0
      %1789 = vmatpush1.msra.mxu0 0.0
      %1790 = vmatprep.mubr.f32.mxu0 0.0
      %1791 = vmatmul.mubr.f32.gmra.mrb[0].mxu0 %v1708
      %v1792 = vpop.f32.mrb[0].mxu0
      %v1793 = vadd.f32 0.0, %v1792
      %v1794 = vpop.f32.mrb[0].mxu0
      %1795 = vdwg.mxu0
      %v1796 = vld [vmem:[%s10] sm:$0xff]
      %v1797 = vld [vmem:[%s10 + $0x8] sm:$0xff]
      %v1798 = vld [vmem:[%s10 + $0x10] sm:$0xff]
      %v1799 = vld [vmem:[%s10 + $0x18] sm:$0xff]
      %v1800 = vld [vmem:[%s10 + $0x20] sm:$0xff]
      %v1801 = vld [vmem:[%s10 + $0x28] sm:$0xff]
      %v1802 = vld [vmem:[%s10 + $0x30] sm:$0xff]
      %v1803 = vld [vmem:[%s10 + $0x38] sm:$0xff]
      %v1804 = vld [vmem:[%s10 + $0x40] sm:$0xff]
      %v1805 = vld [vmem:[%s10 + $0x48] sm:$0xff]
      %v1806 = vld [vmem:[%s10 + $0x50] sm:$0xff]
      %v1807 = vld [vmem:[%s10 + $0x58] sm:$0xff]
      %v1808 = vld [vmem:[%s10 + $0x60] sm:$0xff]
      %v1809 = vld [vmem:[%s10 + $0x68] sm:$0xff]
      %v1810 = vld [vmem:[%s10 + $0x70] sm:$0xff]
      %v1811 = vld [vmem:[%s10 + $0x78] sm:$0xff]
      %1812 = vmatprep.subr.mxu0 0.0
      %1813 = vmatpush1.msra.mxu0 %v1796
      %1814 = vmatprep.subr.mxu0 0.0
      %1815 = vmatpush1.msra.mxu0 %v1797
      %1816 = vmatprep.subr.mxu0 0.0
      %1817 = vmatpush1.msra.mxu0 %v1798
      %1818 = vmatprep.subr.mxu0 0.0
      %1819 = vmatpush1.msra.mxu0 %v1799
      %1820 = vmatprep.subr.mxu0 0.0
      %1821 = vmatpush1.msra.mxu0 %v1800
      %1822 = vmatprep.subr.mxu0 0.0
      %1823 = vmatpush1.msra.mxu0 %v1801
      %1824 = vmatprep.subr.mxu0 0.0
      %1825 = vmatpush1.msra.mxu0 %v1802
      %1826 = vmatprep.subr.mxu0 0.0
      %1827 = vmatpush1.msra.mxu0 %v1803
      %1828 = vmatprep.subr.mxu0 0.0
      %1829 = vmatpush1.msra.mxu0 %v1804
      %1830 = vmatprep.subr.mxu0 0.0
      %1831 = vmatpush1.msra.mxu0 %v1805
      %1832 = vmatprep.subr.mxu0 0.0
      %1833 = vmatpush1.msra.mxu0 %v1806
      %1834 = vmatprep.subr.mxu0 0.0
      %1835 = vmatpush1.msra.mxu0 %v1807
      %1836 = vmatprep.subr.mxu0 0.0
      %1837 = vmatpush1.msra.mxu0 %v1808
      %1838 = vmatprep.subr.mxu0 0.0
      %1839 = vmatpush1.msra.mxu0 %v1809
      %1840 = vmatprep.subr.mxu0 0.0
      %1841 = vmatpush1.msra.mxu0 %v1810
      %1842 = vmatprep.subr.mxu0 0.0
      %1843 = vmatpush1.msra.mxu0 %v1811
      %1844 = vmatprep.subr.mxu0 0.0
      %1845 = vmatpush1.msra.mxu0 0.0
      %1846 = vmatprep.subr.mxu0 0.0
      %1847 = vmatpush1.msra.mxu0 0.0
      %1848 = vmatprep.subr.mxu0 0.0
      %1849 = vmatpush1.msra.mxu0 0.0
      %1850 = vmatprep.subr.mxu0 0.0
      %1851 = vmatpush1.msra.mxu0 0.0
      %1852 = vmatprep.subr.mxu0 0.0
      %1853 = vmatpush1.msra.mxu0 0.0
      %1854 = vmatprep.subr.mxu0 0.0
      %1855 = vmatpush1.msra.mxu0 0.0
      %1856 = vmatprep.subr.mxu0 0.0
      %1857 = vmatpush1.msra.mxu0 0.0
      %1858 = vmatprep.subr.mxu0 0.0
      %1859 = vmatpush1.msra.mxu0 0.0
      %1860 = vmatprep.subr.mxu0 0.0
      %1861 = vmatpush1.msra.mxu0 0.0
      %1862 = vmatprep.subr.mxu0 0.0
      %1863 = vmatpush1.msra.mxu0 0.0
      %1864 = vmatprep.subr.mxu0 0.0
      %1865 = vmatpush1.msra.mxu0 0.0
      %1866 = vmatprep.subr.mxu0 0.0
      %1867 = vmatpush1.msra.mxu0 0.0
      %1868 = vmatprep.subr.mxu0 0.0
      %1869 = vmatpush1.msra.mxu0 0.0
      %1870 = vmatprep.subr.mxu0 0.0
      %1871 = vmatpush1.msra.mxu0 0.0
      %1872 = vmatprep.subr.mxu0 0.0
      %1873 = vmatpush1.msra.mxu0 0.0
      %1874 = vmatprep.subr.mxu0 0.0
      %1875 = vmatpush1.msra.mxu0 0.0
      %1876 = vmatprep.mubr.f32.mxu0 0.0
      %1877 = vmatmul.mubr.f32.gmra.mrb[0].mxu0 %v1708
      %v1878 = vpop.f32.mrb[0].mxu0
      %v1879 = vadd.f32 0.0, %v1878
      %v1880 = vpop.f32.mrb[0].mxu0
      %1881 = vdwg.mxu0
      %v1882 = vsel %vm1703, %v1793, %v1879
      %v1883 = vld [vmem:[%s11] sm:$0x7]
      %v1884 = vadd.f32 %v1882, %v1883
      %1885 = vst [vmem:[%s445] sm:$0x7] %v1884
      %p1886 = scmp.lt.s32.totalorder %s25, 1
      %s1887 = scalar_select %p1886, %s25, 1
      %s1888 = smul.addr %s1887, 4
      %s1889 = scalar_lea.vmem %s12, %s1888
      %p1890 = scmp.lt.s32.totalorder %s25, 1
      %s1891 = scalar_select %p1890, %s25, 1
      %s1892 = smul.addr %s1891, 4
      %s1893 = scalar_lea.vmem %s13, %s1892
      // Predicated region
      $region69: #{sp_swin_forward.1} parent=67 // pred_check
        %p1894 = pneg %p300
      $region70: #{sp_swin_forward.1} parent=67 // pred_check_branch
        %1896 = sbr.rel (%p1894) target = $region72
      $region71: #{sp_swin_forward.1} parent=67 // pred_region
        _
      $region72: #{sp_swin_forward.1} parent=67 // pred_fallthru
        _
      // Predicated region
      $region73: #{sp_swin_forward.1} parent=67 // pred_check
        %p1897 = pneg %p326
      $region74: #{sp_swin_forward.1} parent=67 // pred_check_branch
        %1899 = sbr.rel (%p1897) target = $region76
      $region75: #{sp_swin_forward.1} parent=67 // pred_region
        _
      $region76: #{sp_swin_forward.1} parent=67 // pred_fallthru
        _
    $region68: #{sp_swin_forward.1} parent=5 // pred_fallthru
      _
    %p1900 = scmp.le.s32.totalorder 2, %s20
    // Predicated region
    $region77: #{sp_swin_forward.1} parent=5 // pred_check
      %p1901 = pneg %p1900
    $region78: #{sp_swin_forward.1} parent=5 // pred_check_branch
      %1903 = sbr.rel (%p1901) target = $region80
    $region79: #{sp_swin_forward.1} parent=5 // pred_region
      %s1904 = ssub.s32 %s20, 2
      // Predicated region
      $region81: #{sp_swin_forward.1} parent=79 // pred_check
        %p1905 = pneg %p306
      $region82: #{sp_swin_forward.1} parent=79 // pred_check_branch
        %1907 = sbr.rel (%p1905) target = $region84
      $region83: #{sp_swin_forward.1} parent=79 // pred_region
        %p1908 = scmp.lt.s32.totalorder %s26, 1
        %s1909 = scalar_select %p1908, %s26, 1
        %s1910 = smul.addr %s1909, 4
        %s1911 = scalar_lea.vmem %s12, %s1910
      $region84: #{sp_swin_forward.1} parent=79 // pred_fallthru
        _
      // Predicated region
      $region85: #{sp_swin_forward.1} parent=79 // pred_check
        %p1912 = pneg %p332
      $region86: #{sp_swin_forward.1} parent=79 // pred_check_branch
        %1914 = sbr.rel (%p1912) target = $region88
      $region87: #{sp_swin_forward.1} parent=79 // pred_region
        %p1915 = scmp.lt.s32.totalorder %s26, 1
        %s1916 = scalar_select %p1915, %s26, 1
        %s1917 = smul.addr %s1916, 4
        %s1918 = scalar_lea.vmem %s13, %s1917
      $region88: #{sp_swin_forward.1} parent=79 // pred_fallthru
        _
    $region80: #{sp_swin_forward.1} parent=5 // pred_fallthru
      _
  $region6: #{sp_swin_forward.1} parent=0 // loop_footer
    %s24 = sadd.s32 1, %s20
  $region7: #{sp_swin_forward.1} parent=0 // loop_footer_branch
    %19 = sbr.rel target = $region3
  $region8: #{sp_swin_forward.1} parent=0 // loop_exit
    _

</llo_original>
